<compile_context>
chip_gen: v7x
topology: tpu7x:2x2x1
jax: 0.10.0
libtpu: 0.0.40
codegen_flags: <defaults>
</compile_context>

<pallas_src>
import jax
import jax.numpy as jnp
from jax.experimental import pallas as pl
from jax.experimental.pallas import tpu as pltpu

NUM_LAYERS = 5            # num_layers default
EMB_DIM = 128             # emb_dim (lane-aligned stand-in for 300 -> would pad to 384)
HID_DIM = 2 * EMB_DIM     # GIN MLP hidden width
EDGE_DIM = 4              # edge-attr feature width
NUM_TASKS = 1
BN_EPS = 1e-5
GIN_EPS = 0.0             # GINConv eps Parameter is initialised to 0


def gnn_discriminator_kernel(
    # streamed / resident inputs (VMEM), pool left in HBM (pl.ANY)
    xyz_ref, eattr_ref, s_ref, t_ref, pool_hbm_ref,
    wenc_ref, benc_ref, wedge_ref, bedge_ref,
    w1_ref, b1_ref, w2_ref, b2_ref,
    wg_ref, bg_ref,
    # output
    out_ref,
    # scratch: node state, persistent across grid (layer) steps
    h_scr,
):
    f32 = jnp.float32
    bf16 = jnp.bfloat16
    l = pl.program_id(0)
    last = pl.num_programs(0) - 1

    # ---- layer 0: node encoder Linear(3 -> D) as 3 VPU scaled-adds ----------
    @pl.when(l == 0)
    def _init():
        xyz = xyz_ref[...]                       # [N, 3]
        w = wenc_ref[...]                        # [3, D]
        h_scr[...] = (xyz[:, 0:1] * w[0:1, :]
                      + xyz[:, 1:2] * w[1:2, :]
                      + xyz[:, 2:3] * w[2:3, :]
                      + benc_ref[...])

    h = h_scr[...]                               # [N, D] f32

    # ---- in-kernel edge encoder Linear(4 -> D) as 4 VPU scaled-adds ---------
    ea = eattr_ref[...]                          # [E, 4]
    we = wedge_ref[...]                          # [4, D] (per layer)
    edge_emb = (ea[:, 0:1] * we[0:1, :] + ea[:, 1:2] * we[1:2, :]
                + ea[:, 2:3] * we[2:3, :] + ea[:, 3:4] * we[3:4, :]
                + bedge_ref[...])                # [E, D] f32

    # ---- GIN message passing on the MXU --------------------------------------
    # gather:  h[src]  == S[E,N] @ h
    h_src = jnp.dot(s_ref[...], h.astype(bf16), preferred_element_type=f32)
    msgs = jnp.maximum(h_src + edge_emb, 0.0)                      # [E, D]
    # scatter: agg[i] = sum_{dst[e]==i} msgs[e]  == T[N,E] @ msgs
    agg = jnp.dot(t_ref[...], msgs.astype(bf16), preferred_element_type=f32)

    pre = (1.0 + GIN_EPS) * h + agg                                # [N, D]

    # ---- GIN MLP (BatchNorm folded into w1/b1 and w2/b2), bf16 x bf16 -> f32 -
    z = jnp.dot(pre.astype(bf16), w1_ref[...], preferred_element_type=f32) + b1_ref[...]
    z = jnp.maximum(z, 0.0)
    z = jnp.dot(z.astype(bf16), w2_ref[...], preferred_element_type=f32) + b2_ref[...]

    # ReLU on all but the last layer (JK='last', residual=False, drop=0, eval)
    @pl.when(l != last)
    def _carry():
        h_scr[...] = jnp.maximum(z, 0.0)

    # ---- last layer: global_add_pool + graph_pred_linear + Sigmoid ----------
    @pl.when(l == last)
    def _finalize():
        def _pool_head(pool_vmem, sem):
            cp = pltpu.make_async_copy(pool_hbm_ref, pool_vmem, sem.at[0])
            cp.start()
            cp.wait()
            h_graph = jnp.dot(pool_vmem[...], z.astype(bf16),
                              preferred_element_type=f32)                      # [G, D]
            logits = jnp.dot(h_graph, wg_ref[...],
                             preferred_element_type=f32) + bg_ref[...]         # [G, 1]
            out = 1.0 / (1.0 + jnp.exp(-logits))                               # Sigmoid
            out_ref[...] = jnp.clip(out, 0.0, 20.0)                            # eval branch

        pl.run_scoped(
            _pool_head,
            pltpu.VMEM(pool_hbm_ref.shape, pool_hbm_ref.dtype),
            pltpu.SemaphoreType.DMA((1,)),
        )


def gnn_discriminator_forward(xyz, edge_index, edge_attr, batch, params, num_graphs):
    f32, bf16 = jnp.float32, jnp.bfloat16
    n = xyz.shape[0]
    e = edge_attr.shape[0]
    src = edge_index[0].astype(jnp.int32)
    dst = edge_index[1].astype(jnp.int32)

    # Layer-invariant gather / scatter incidence operators (0/1 -> exact in bf16).
    node_ids = jnp.arange(n, dtype=jnp.int32)
    s_op = (src[:, None] == node_ids[None, :]).astype(bf16)       # [E, N]: S @ h == h[src]
    t_op = (node_ids[:, None] == dst[None, :]).astype(bf16)       # [N, E]: scatter-add
    pool = (jnp.arange(num_graphs, dtype=jnp.int32)[:, None]
            == batch[None, :]).astype(bf16)                        # [G, N], stays in HBM

    # Fold eval-mode BatchNorm (general running-stats formula) into the Linears;
    # stream the folded MLP weights in bf16, keep biases in f32.
    inv1 = params["g1"] / jnp.sqrt(params["rv1"] + BN_EPS)          # [L, 1, 2D]
    w1f = (params["w1"] * inv1).astype(bf16)
    b1f = (params["b1"] - params["rm1"]) * inv1 + params["be1"]
    inv2 = params["g2"] / jnp.sqrt(params["rv2"] + BN_EPS)          # [L, 1, D]
    w2f = (params["w2"] * inv2).astype(bf16)
    b2f = (params["b2"] - params["rm2"]) * inv2 + params["be2"]

    def const2(l):          # full-array operands fetched once (block index constant)
        return (0, 0)

    def per_layer(l):       # per-layer streamed operands
        return (l, 0, 0)

    grid_spec = pltpu.PrefetchScalarGridSpec(
        num_scalar_prefetch=0,
        grid=(NUM_LAYERS,),
        in_specs=[
            pl.BlockSpec((n, 3), const2),                        # xyz
            pl.BlockSpec((e, EDGE_DIM), const2),                 # edge_attr
            pl.BlockSpec((e, n), const2),                        # S (src gather op)
            pl.BlockSpec((n, e), const2),                        # T (dst scatter op)
            pl.BlockSpec(memory_space=pl.ANY),                   # pool [G,N] stays in HBM
            pl.BlockSpec((3, EMB_DIM), const2),                  # w_enc
            pl.BlockSpec((1, EMB_DIM), const2),                  # b_enc
            pl.BlockSpec((None, EDGE_DIM, EMB_DIM), per_layer),  # w_edge per layer
            pl.BlockSpec((None, 1, EMB_DIM), per_layer),         # b_edge per layer
            pl.BlockSpec((None, EMB_DIM, HID_DIM), per_layer),   # w1 (BN folded, bf16)
            pl.BlockSpec((None, 1, HID_DIM), per_layer),         # b1
            pl.BlockSpec((None, HID_DIM, EMB_DIM), per_layer),   # w2 (BN folded, bf16)
            pl.BlockSpec((None, 1, EMB_DIM), per_layer),         # b2
            pl.BlockSpec((EMB_DIM, NUM_TASKS), const2),          # wg
            pl.BlockSpec((1, NUM_TASKS), const2),                # bg
        ],
        out_specs=pl.BlockSpec((num_graphs, NUM_TASKS), const2),
        scratch_shapes=[
            pltpu.VMEM((n, EMB_DIM), f32),   # h (node state, persists across layers)
        ],
    )

    return pl.pallas_call(
        gnn_discriminator_kernel,
        out_shape=jax.ShapeDtypeStruct((num_graphs, NUM_TASKS), f32),
        grid_spec=grid_spec,
        compiler_params=pltpu.CompilerParams(
            dimension_semantics=("arbitrary",),      # layers are sequential (state carry)
            vmem_limit_bytes=48 * 1024 * 1024,       # safe on v7x (64 MiB); headroom on v5e/v6e
        ),
    )(xyz, edge_attr, s_op, t_op, pool,
      params["w_enc"], params["b_enc"], params["w_edge"], params["b_edge"],
      w1f, b1f, w2f, b2f,
      params["wg"], params["bg"])


def reference_forward(xyz, edge_index, edge_attr, batch, params, num_graphs):
    """Pure-f32 JAX reference of the same forward semantics (for validation)."""
    src, dst = edge_index[0], edge_index[1]
    h = xyz @ params["w_enc"] + params["b_enc"][0]
    for l in range(NUM_LAYERS):
        e_emb = edge_attr @ params["w_edge"][l] + params["b_edge"][l, 0]
        msg = jnp.maximum(h[src] + e_emb, 0.0)
        agg = jnp.zeros_like(h).at[dst].add(msg)
        pre = (1.0 + GIN_EPS) * h + agg
        z = pre @ params["w1"][l] + params["b1"][l, 0]
        z = ((z - params["rm1"][l, 0]) / jnp.sqrt(params["rv1"][l, 0] + BN_EPS)
             * params["g1"][l, 0] + params["be1"][l, 0])
        z = jnp.maximum(z, 0.0)
        z = z @ params["w2"][l] + params["b2"][l, 0]
        z = ((z - params["rm2"][l, 0]) / jnp.sqrt(params["rv2"][l, 0] + BN_EPS)
             * params["g2"][l, 0] + params["be2"][l, 0])
        if l < NUM_LAYERS - 1:
            z = jnp.maximum(z, 0.0)
        h = z
    h_graph = jnp.zeros((num_graphs, h.shape[1]), jnp.float32).at[batch].add(h)
    out = jax.nn.sigmoid(h_graph @ params["wg"] + params["bg"][0])
    return jnp.clip(out, 0.0, 20.0)


def init_params(key):
    ks = jax.random.split(key, 18)
    f32 = jnp.float32

    def nrm(k, shape, scale=0.1):
        return scale * jax.random.normal(k, shape, dtype=f32)

    return {
        "w_enc": nrm(ks[0], (3, EMB_DIM)),
        "b_enc": nrm(ks[1], (1, EMB_DIM), 0.01),
        "w_edge": nrm(ks[2], (NUM_LAYERS, EDGE_DIM, EMB_DIM)),
        "b_edge": nrm(ks[3], (NUM_LAYERS, 1, EMB_DIM), 0.01),
        "w1": nrm(ks[4], (NUM_LAYERS, EMB_DIM, HID_DIM)),
        "b1": nrm(ks[5], (NUM_LAYERS, 1, HID_DIM), 0.01),
        "g1": 1.0 + nrm(ks[6], (NUM_LAYERS, 1, HID_DIM), 0.05),
        "be1": nrm(ks[7], (NUM_LAYERS, 1, HID_DIM), 0.01),
        "rm1": nrm(ks[8], (NUM_LAYERS, 1, HID_DIM), 0.05),
        "rv1": 1.0 + jnp.abs(nrm(ks[9], (NUM_LAYERS, 1, HID_DIM), 0.1)),
        "w2": nrm(ks[10], (NUM_LAYERS, HID_DIM, EMB_DIM)),
        "b2": nrm(ks[11], (NUM_LAYERS, 1, EMB_DIM), 0.01),
        "g2": 1.0 + nrm(ks[12], (NUM_LAYERS, 1, EMB_DIM), 0.05),
        "be2": nrm(ks[13], (NUM_LAYERS, 1, EMB_DIM), 0.01),
        "rm2": nrm(ks[14], (NUM_LAYERS, 1, EMB_DIM), 0.05),
        "rv2": 1.0 + jnp.abs(nrm(ks[15], (NUM_LAYERS, 1, EMB_DIM), 0.1)),
        "wg": nrm(ks[16], (EMB_DIM, NUM_TASKS)),
        "bg": nrm(ks[17], (1, NUM_TASKS), 0.01),
    }


if __name__ == "__main__":
    key = jax.random.PRNGKey(0)
    k_param, k_xyz, k_src, k_dst, k_ea = jax.random.split(key, 5)

    N, E, G = 32, 64, 2   # nodes, edges, graphs (small example sizes)
    params = init_params(k_param)

    xyz = jax.random.normal(k_xyz, (N, 3), dtype=jnp.float32)
    edge_index = jnp.stack([
        jax.random.randint(k_src, (E,), 0, N),
        jax.random.randint(k_dst, (E,), 0, N),
    ]).astype(jnp.int32)                                 # [2, E]
    edge_attr = jax.random.normal(k_ea, (E, EDGE_DIM), dtype=jnp.float32)
    batch = jnp.concatenate([jnp.zeros(N // 2, jnp.int32),
                             jnp.ones(N - N // 2, jnp.int32)])

    out = gnn_discriminator_forward(xyz, edge_index, edge_attr, batch, params, G)
    out = jax.block_until_ready(out)

    ref = reference_forward(xyz, edge_index, edge_attr, batch, params, G)
    assert out.shape == (G, NUM_TASKS)
    # Kernel streams weights/activations in bf16 (f32 MXU accumulation); agreement
    # with the pure-f32 reference is at mixed-precision level.
    assert jnp.allclose(out, ref, atol=2e-2, rtol=2e-2), (out, ref)
    print("KERNEL_OK")
</pallas_src>

<mosaic_0001>
module attributes {stable_mosaic.version = 11 : i64} {
  func.func @gnn_discriminator_kernel(%arg0: i32, %arg1: memref<32x3xf32, #tpu.memory_space<vmem>>, %arg2: memref<64x4xf32, #tpu.memory_space<vmem>>, %arg3: memref<64x32xbf16, #tpu.memory_space<vmem>>, %arg4: memref<32x64xbf16, #tpu.memory_space<vmem>>, %arg5: memref<2x32xbf16, #tpu.memory_space<any>>, %arg6: memref<3x128xf32, #tpu.memory_space<vmem>>, %arg7: memref<1x128xf32, #tpu.memory_space<vmem>>, %arg8: memref<1x4x128xf32, #tpu.memory_space<vmem>>, %arg9: memref<1x1x128xf32, #tpu.memory_space<vmem>>, %arg10: memref<1x128x256xbf16, #tpu.memory_space<vmem>>, %arg11: memref<1x1x256xf32, #tpu.memory_space<vmem>>, %arg12: memref<1x256x128xbf16, #tpu.memory_space<vmem>>, %arg13: memref<1x1x128xf32, #tpu.memory_space<vmem>>, %arg14: memref<128x1xf32, #tpu.memory_space<vmem>>, %arg15: memref<1x1xf32, #tpu.memory_space<vmem>>, %arg16: memref<2x1xf32, #tpu.memory_space<vmem>>, %arg17: memref<32x128xf32, #tpu.memory_space<vmem>>) attributes {dimension_semantics = [#tpu.dimension_semantics<arbitrary>], iteration_bounds = array<i64: 5>, scalar_prefetch = 0 : i64, scratch_operands = 1 : i64, tpu.core_type = #tpu.core_type<tc>, window_params = [{pipeline_mode = #tpu.pipeline_mode<synchronous>, transform_indices = @transform_0, window_bounds = array<i64: 32, 3>}, {pipeline_mode = #tpu.pipeline_mode<synchronous>, transform_indices = @transform_1, window_bounds = array<i64: 64, 4>}, {pipeline_mode = #tpu.pipeline_mode<synchronous>, transform_indices = @transform_2, window_bounds = array<i64: 64, 32>}, {pipeline_mode = #tpu.pipeline_mode<synchronous>, transform_indices = @transform_3, window_bounds = array<i64: 32, 64>}, {}, {pipeline_mode = #tpu.pipeline_mode<synchronous>, transform_indices = @transform_5, window_bounds = array<i64: 3, 128>}, {pipeline_mode = #tpu.pipeline_mode<synchronous>, transform_indices = @transform_6, window_bounds = array<i64: 1, 128>}, {transform_indices = @transform_7, window_bounds = array<i64: 1, 4, 128>}, {transform_indices = @transform_8, window_bounds = array<i64: 1, 1, 128>}, {transform_indices = @transform_9, window_bounds = array<i64: 1, 128, 256>}, {transform_indices = @transform_10, window_bounds = array<i64: 1, 1, 256>}, {transform_indices = @transform_11, window_bounds = array<i64: 1, 256, 128>}, {transform_indices = @transform_12, window_bounds = array<i64: 1, 1, 128>}, {pipeline_mode = #tpu.pipeline_mode<synchronous>, transform_indices = @transform_13, window_bounds = array<i64: 128, 1>}, {pipeline_mode = #tpu.pipeline_mode<synchronous>, transform_indices = @transform_14, window_bounds = array<i64: 1, 1>}, {pipeline_mode = #tpu.pipeline_mode<synchronous>, transform_indices = @transform_15, window_bounds = array<i64: 2, 1>}]} {
    %c0_i32 = arith.constant 0 : i32
    %0 = arith.cmpi eq, %arg0, %c0_i32 : i32
    %1 = arith.extui %0 : i1 to i32
    %c0_i32_0 = arith.constant 0 : i32
    %2 = arith.cmpi ne, %1, %c0_i32_0 : i32
    scf.if %2 {
      %c0_35 = arith.constant 0 : index
      %c0_36 = arith.constant 0 : index
      %70 = vector.load %arg1[%c0_35, %c0_36] : memref<32x3xf32, #tpu.memory_space<vmem>>, vector<32x3xf32>
      %c0_37 = arith.constant 0 : index
      %c0_38 = arith.constant 0 : index
      %71 = vector.load %arg6[%c0_37, %c0_38] : memref<3x128xf32, #tpu.memory_space<vmem>>, vector<3x128xf32>
      %72 = vector.extract_strided_slice %70 {offsets = [0, 0], sizes = [32, 1], strides = [1, 1]} : vector<32x3xf32> to vector<32x1xf32>
      %73 = vector.extract_strided_slice %71 {offsets = [0, 0], sizes = [1, 128], strides = [1, 1]} : vector<3x128xf32> to vector<1x128xf32>
      %74 = vector.broadcast %72 : vector<32x1xf32> to vector<32x128xf32>
      %75 = vector.broadcast %73 : vector<1x128xf32> to vector<32x128xf32>
      %76 = arith.mulf %74, %75 : vector<32x128xf32>
      %77 = vector.extract_strided_slice %70 {offsets = [0, 1], sizes = [32, 1], strides = [1, 1]} : vector<32x3xf32> to vector<32x1xf32>
      %78 = vector.extract_strided_slice %71 {offsets = [1, 0], sizes = [1, 128], strides = [1, 1]} : vector<3x128xf32> to vector<1x128xf32>
      %79 = vector.broadcast %77 : vector<32x1xf32> to vector<32x128xf32>
      %80 = vector.broadcast %78 : vector<1x128xf32> to vector<32x128xf32>
      %81 = arith.mulf %79, %80 : vector<32x128xf32>
      %82 = arith.addf %76, %81 : vector<32x128xf32>
      %83 = vector.extract_strided_slice %70 {offsets = [0, 2], sizes = [32, 1], strides = [1, 1]} : vector<32x3xf32> to vector<32x1xf32>
      %84 = vector.extract_strided_slice %71 {offsets = [2, 0], sizes = [1, 128], strides = [1, 1]} : vector<3x128xf32> to vector<1x128xf32>
      %85 = vector.broadcast %83 : vector<32x1xf32> to vector<32x128xf32>
      %86 = vector.broadcast %84 : vector<1x128xf32> to vector<32x128xf32>
      %87 = arith.mulf %85, %86 : vector<32x128xf32>
      %88 = arith.addf %82, %87 : vector<32x128xf32>
      %c0_39 = arith.constant 0 : index
      %c0_40 = arith.constant 0 : index
      %89 = vector.load %arg7[%c0_39, %c0_40] : memref<1x128xf32, #tpu.memory_space<vmem>>, vector<1x128xf32>
      %90 = vector.broadcast %89 : vector<1x128xf32> to vector<32x128xf32>
      %91 = arith.addf %88, %90 : vector<32x128xf32>
      %c0_41 = arith.constant 0 : index
      %c0_42 = arith.constant 0 : index
      %92 = vector.load %arg17[%c0_41, %c0_42] : memref<32x128xf32, #tpu.memory_space<vmem>>, vector<32x128xf32>
      tpu.vector_store %arg17[%c0_41, %c0_42], %91 {strides = array<i32>} : memref<32x128xf32, #tpu.memory_space<vmem>>, vector<32x128xf32>,
    } else {
    }
    %c0 = arith.constant 0 : index
    %c0_1 = arith.constant 0 : index
    %3 = vector.load %arg17[%c0, %c0_1] : memref<32x128xf32, #tpu.memory_space<vmem>>, vector<32x128xf32>
    %c0_2 = arith.constant 0 : index
    %c0_3 = arith.constant 0 : index
    %4 = vector.load %arg2[%c0_2, %c0_3] : memref<64x4xf32, #tpu.memory_space<vmem>>, vector<64x4xf32>
    %c0_4 = arith.constant 0 : index
    %c0_5 = arith.constant 0 : index
    %c0_6 = arith.constant 0 : index
    %5 = vector.load %arg8[%c0_4, %c0_5, %c0_6] : memref<1x4x128xf32, #tpu.memory_space<vmem>>, vector<1x4x128xf32>
    %6 = vector.shape_cast %5 : vector<1x4x128xf32> to vector<4x128xf32>
    %7 = vector.extract_strided_slice %4 {offsets = [0, 0], sizes = [64, 1], strides = [1, 1]} : vector<64x4xf32> to vector<64x1xf32>
    %8 = vector.extract_strided_slice %6 {offsets = [0, 0], sizes = [1, 128], strides = [1, 1]} : vector<4x128xf32> to vector<1x128xf32>
    %9 = vector.broadcast %7 : vector<64x1xf32> to vector<64x128xf32>
    %10 = vector.broadcast %8 : vector<1x128xf32> to vector<64x128xf32>
    %11 = arith.mulf %9, %10 : vector<64x128xf32>
    %12 = vector.extract_strided_slice %4 {offsets = [0, 1], sizes = [64, 1], strides = [1, 1]} : vector<64x4xf32> to vector<64x1xf32>
    %13 = vector.extract_strided_slice %6 {offsets = [1, 0], sizes = [1, 128], strides = [1, 1]} : vector<4x128xf32> to vector<1x128xf32>
    %14 = vector.broadcast %12 : vector<64x1xf32> to vector<64x128xf32>
    %15 = vector.broadcast %13 : vector<1x128xf32> to vector<64x128xf32>
    %16 = arith.mulf %14, %15 : vector<64x128xf32>
    %17 = arith.addf %11, %16 : vector<64x128xf32>
    %18 = vector.extract_strided_slice %4 {offsets = [0, 2], sizes = [64, 1], strides = [1, 1]} : vector<64x4xf32> to vector<64x1xf32>
    %19 = vector.extract_strided_slice %6 {offsets = [2, 0], sizes = [1, 128], strides = [1, 1]} : vector<4x128xf32> to vector<1x128xf32>
    %20 = vector.broadcast %18 : vector<64x1xf32> to vector<64x128xf32>
    %21 = vector.broadcast %19 : vector<1x128xf32> to vector<64x128xf32>
    %22 = arith.mulf %20, %21 : vector<64x128xf32>
    %23 = arith.addf %17, %22 : vector<64x128xf32>
    %24 = vector.extract_strided_slice %4 {offsets = [0, 3], sizes = [64, 1], strides = [1, 1]} : vector<64x4xf32> to vector<64x1xf32>
    %25 = vector.extract_strided_slice %6 {offsets = [3, 0], sizes = [1, 128], strides = [1, 1]} : vector<4x128xf32> to vector<1x128xf32>
    %26 = vector.broadcast %24 : vector<64x1xf32> to vector<64x128xf32>
    %27 = vector.broadcast %25 : vector<1x128xf32> to vector<64x128xf32>
    %28 = arith.mulf %26, %27 : vector<64x128xf32>
    %29 = arith.addf %23, %28 : vector<64x128xf32>
    %c0_7 = arith.constant 0 : index
    %c0_8 = arith.constant 0 : index
    %c0_9 = arith.constant 0 : index
    %30 = vector.load %arg9[%c0_7, %c0_8, %c0_9] : memref<1x1x128xf32, #tpu.memory_space<vmem>>, vector<1x1x128xf32>
    %31 = vector.shape_cast %30 : vector<1x1x128xf32> to vector<1x128xf32>
    %32 = vector.broadcast %31 : vector<1x128xf32> to vector<64x128xf32>
    %33 = arith.addf %29, %32 : vector<64x128xf32>
    %c0_10 = arith.constant 0 : index
    %c0_11 = arith.constant 0 : index
    %34 = vector.load %arg3[%c0_10, %c0_11] : memref<64x32xbf16, #tpu.memory_space<vmem>>, vector<64x32xbf16>
    %35 = arith.truncf %3 : vector<32x128xf32> to vector<32x128xbf16>
    %cst = arith.constant dense<0.000000e+00> : vector<64x128xf32>
    %36 = tpu.matmul %34, %35, %cst {dimension_numbers = #tpu.dot_dimension_numbers<[1], [0], [0], [1], [0, 0, 1, 1], [], []>} : vector<64x32xbf16>, vector<32x128xbf16>, vector<64x128xf32> -> vector<64x128xf32>
    %37 = arith.addf %36, %33 : vector<64x128xf32>
    %cst_12 = arith.constant 0.000000e+00 : f32
    %38 = vector.broadcast %cst_12 : f32 to vector<64x128xf32>
    %39 = arith.maximumf %37, %38 : vector<64x128xf32>
    %c0_13 = arith.constant 0 : index
    %c0_14 = arith.constant 0 : index
    %40 = vector.load %arg4[%c0_13, %c0_14] : memref<32x64xbf16, #tpu.memory_space<vmem>>, vector<32x64xbf16>
    %41 = arith.truncf %39 : vector<64x128xf32> to vector<64x128xbf16>
    %cst_15 = arith.constant dense<0.000000e+00> : vector<32x128xf32>
    %42 = tpu.matmul %40, %41, %cst_15 {dimension_numbers = #tpu.dot_dimension_numbers<[1], [0], [0], [1], [0, 0, 1, 1], [], []>} : vector<32x64xbf16>, vector<64x128xbf16>, vector<32x128xf32> -> vector<32x128xf32>
    %cst_16 = arith.constant 1.000000e+00 : f32
    %43 = vector.broadcast %cst_16 : f32 to vector<32x128xf32>
    %44 = arith.mulf %43, %3 : vector<32x128xf32>
    %45 = arith.addf %44, %42 : vector<32x128xf32>
    %46 = arith.truncf %45 : vector<32x128xf32> to vector<32x128xbf16>
    %c0_17 = arith.constant 0 : index
    %c0_18 = arith.constant 0 : index
    %c0_19 = arith.constant 0 : index
    %47 = vector.load %arg10[%c0_17, %c0_18, %c0_19] : memref<1x128x256xbf16, #tpu.memory_space<vmem>>, vector<1x128x256xbf16>
    %48 = vector.shape_cast %47 : vector<1x128x256xbf16> to vector<128x256xbf16>
    %cst_20 = arith.constant dense<0.000000e+00> : vector<32x256xf32>
    %49 = tpu.matmul %46, %48, %cst_20 {dimension_numbers = #tpu.dot_dimension_numbers<[1], [0], [0], [1], [0, 0, 1, 1], [], []>} : vector<32x128xbf16>, vector<128x256xbf16>, vector<32x256xf32> -> vector<32x256xf32>
    %c0_21 = arith.constant 0 : index
    %c0_22 = arith.constant 0 : index
    %c0_23 = arith.constant 0 : index
    %50 = vector.load %arg11[%c0_21, %c0_22, %c0_23] : memref<1x1x256xf32, #tpu.memory_space<vmem>>, vector<1x1x256xf32>
    %51 = vector.shape_cast %50 : vector<1x1x256xf32> to vector<1x256xf32>
    %52 = vector.broadcast %51 : vector<1x256xf32> to vector<32x256xf32>
    %53 = arith.addf %49, %52 : vector<32x256xf32>
    %cst_24 = arith.constant 0.000000e+00 : f32
    %54 = vector.broadcast %cst_24 : f32 to vector<32x256xf32>
    %55 = arith.maximumf %53, %54 : vector<32x256xf32>
    %56 = arith.truncf %55 : vector<32x256xf32> to vector<32x256xbf16>
    %c0_25 = arith.constant 0 : index
    %c0_26 = arith.constant 0 : index
    %c0_27 = arith.constant 0 : index
    %57 = vector.load %arg12[%c0_25, %c0_26, %c0_27] : memref<1x256x128xbf16, #tpu.memory_space<vmem>>, vector<1x256x128xbf16>
    %58 = vector.shape_cast %57 : vector<1x256x128xbf16> to vector<256x128xbf16>
    %cst_28 = arith.constant dense<0.000000e+00> : vector<32x128xf32>
    %59 = tpu.matmul %56, %58, %cst_28 {dimension_numbers = #tpu.dot_dimension_numbers<[1], [0], [0], [1], [0, 0, 1, 1], [], []>} : vector<32x256xbf16>, vector<256x128xbf16>, vector<32x128xf32> -> vector<32x128xf32>
    %c0_29 = arith.constant 0 : index
    %c0_30 = arith.constant 0 : index
    %c0_31 = arith.constant 0 : index
    %60 = vector.load %arg13[%c0_29, %c0_30, %c0_31] : memref<1x1x128xf32, #tpu.memory_space<vmem>>, vector<1x1x128xf32>
    %61 = vector.shape_cast %60 : vector<1x1x128xf32> to vector<1x128xf32>
    %62 = vector.broadcast %61 : vector<1x128xf32> to vector<32x128xf32>
    %63 = arith.addf %59, %62 : vector<32x128xf32>
    %c4_i32 = arith.constant 4 : i32
    %64 = arith.cmpi ne, %arg0, %c4_i32 : i32
    %65 = arith.extui %64 : i1 to i32
    %c0_i32_32 = arith.constant 0 : i32
    %66 = arith.cmpi ne, %65, %c0_i32_32 : i32
    scf.if %66 {
      %cst_35 = arith.constant 0.000000e+00 : f32
      %70 = vector.broadcast %cst_35 : f32 to vector<32x128xf32>
      %71 = arith.maximumf %63, %70 : vector<32x128xf32>
      %c0_36 = arith.constant 0 : index
      %c0_37 = arith.constant 0 : index
      %72 = vector.load %arg17[%c0_36, %c0_37] : memref<32x128xf32, #tpu.memory_space<vmem>>, vector<32x128xf32>
      tpu.vector_store %arg17[%c0_36, %c0_37], %71 {strides = array<i32>} : memref<32x128xf32, #tpu.memory_space<vmem>>, vector<32x128xf32>,
    } else {
    }
    %c4_i32_33 = arith.constant 4 : i32
    %67 = arith.cmpi eq, %arg0, %c4_i32_33 : i32
    %68 = arith.extui %67 : i1 to i32
    %c0_i32_34 = arith.constant 0 : i32
    %69 = arith.cmpi ne, %68, %c0_i32_34 : i32
    scf.if %69 {
      "tpu.region"() ({
        %alloca = memref.alloca() : memref<2x32xbf16, #tpu.memory_space<vmem>>
        %70 = tpu.sem_alloc : memref<1x!tpu.dma_semaphore, #tpu.memory_space<semaphore_mem>>
        %c0_i32_35 = arith.constant 0 : i32
        %71 = tpu.memref_slice %70[%c0_i32_35] : memref<1x!tpu.dma_semaphore, #tpu.memory_space<semaphore_mem>> -> memref<1x!tpu.dma_semaphore, #tpu.memory_space<semaphore_mem>>
        %72 = tpu.memref_squeeze %71 : memref<1x!tpu.dma_semaphore, #tpu.memory_space<semaphore_mem>> -> memref<!tpu.dma_semaphore, #tpu.memory_space<semaphore_mem>>
        tpu.enqueue_dma source(%arg5 : memref<2x32xbf16, #tpu.memory_space<any>>) target(%alloca : memref<2x32xbf16, #tpu.memory_space<vmem>>) target_semaphore(%72 : memref<!tpu.dma_semaphore, #tpu.memory_space<semaphore_mem>>)
        %c0_i32_36 = arith.constant 0 : i32
        %73 = tpu.memref_slice %70[%c0_i32_36] : memref<1x!tpu.dma_semaphore, #tpu.memory_space<semaphore_mem>> -> memref<1x!tpu.dma_semaphore, #tpu.memory_space<semaphore_mem>>
        %74 = tpu.memref_squeeze %73 : memref<1x!tpu.dma_semaphore, #tpu.memory_space<semaphore_mem>> -> memref<!tpu.dma_semaphore, #tpu.memory_space<semaphore_mem>>
        tpu.wait_dma2 semaphore(%74 : memref<!tpu.dma_semaphore, #tpu.memory_space<semaphore_mem>>) src(%arg5 : memref<2x32xbf16, #tpu.memory_space<any>>) dst(%alloca : memref<2x32xbf16, #tpu.memory_space<vmem>>)
        %c0_37 = arith.constant 0 : index
        %c0_38 = arith.constant 0 : index
        %75 = vector.load %alloca[%c0_37, %c0_38] : memref<2x32xbf16, #tpu.memory_space<vmem>>, vector<2x32xbf16>
        %76 = arith.truncf %63 : vector<32x128xf32> to vector<32x128xbf16>
        %cst_39 = arith.constant dense<0.000000e+00> : vector<2x128xf32>
        %77 = tpu.matmul %75, %76, %cst_39 {dimension_numbers = #tpu.dot_dimension_numbers<[1], [0], [0], [1], [0, 0, 1, 1], [], []>} : vector<2x32xbf16>, vector<32x128xbf16>, vector<2x128xf32> -> vector<2x128xf32>
        %c0_40 = arith.constant 0 : index
        %c0_41 = arith.constant 0 : index
        %78 = vector.load %arg14[%c0_40, %c0_41] : memref<128x1xf32, #tpu.memory_space<vmem>>, vector<128x1xf32>
        %cst_42 = arith.constant dense<0.000000e+00> : vector<2x1xf32>
        %79 = tpu.matmul %77, %78, %cst_42 {dimension_numbers = #tpu.dot_dimension_numbers<[1], [0], [0], [1], [0, 0, 1, 1], [], []>} : vector<2x128xf32>, vector<128x1xf32>, vector<2x1xf32> -> vector<2x1xf32>
        %c0_43 = arith.constant 0 : index
        %c0_44 = arith.constant 0 : index
        %80 = vector.load %arg15[%c0_43, %c0_44] : memref<1x1xf32, #tpu.memory_space<vmem>>, vector<1x1xf32>
        %81 = vector.broadcast %80 : vector<1x1xf32> to vector<2x1xf32>
        %82 = arith.addf %79, %81 : vector<2x1xf32>
        %cst_45 = arith.constant 0.000000e+00 : f32
        %83 = vector.broadcast %cst_45 : f32 to vector<2x1xf32>
        %84 = arith.subf %83, %82 : vector<2x1xf32>
        %85 = math.exp %84 : vector<2x1xf32>
        %cst_46 = arith.constant 1.000000e+00 : f32
        %86 = vector.broadcast %cst_46 : f32 to vector<2x1xf32>
        %87 = arith.addf %86, %85 : vector<2x1xf32>
        %cst_47 = arith.constant 1.000000e+00 : f32
        %88 = vector.broadcast %cst_47 : f32 to vector<2x1xf32>
        %89 = arith.divf %88, %87 : vector<2x1xf32>
        %cst_48 = arith.constant 0.000000e+00 : f32
        %cst_49 = arith.constant 2.000000e+01 : f32
        %90 = vector.broadcast %cst_48 : f32 to vector<2x1xf32>
        %91 = arith.maximumf %90, %89 : vector<2x1xf32>
        %92 = vector.broadcast %cst_49 : f32 to vector<2x1xf32>
        %93 = arith.minimumf %92, %91 : vector<2x1xf32>
        %c0_50 = arith.constant 0 : index
        %c0_51 = arith.constant 0 : index
        %94 = vector.load %arg16[%c0_50, %c0_51] : memref<2x1xf32, #tpu.memory_space<vmem>>, vector<2x1xf32>
        tpu.vector_store %arg16[%c0_50, %c0_51], %93 {strides = array<i32>} : memref<2x1xf32, #tpu.memory_space<vmem>>, vector<2x1xf32>,
        tpu.yield
      }) : () -> ()
    } else {
    }
    return
  }
  func.func @transform_0(%arg0: i32) -> (i32, i32) {
    %c0_i32 = arith.constant 0 : i32
    %c0_i32_0 = arith.constant 0 : i32
    %c0_i32_1 = arith.constant 0 : i32
    return %c0_i32, %c0_i32_0 : i32, i32
  }
  func.func @transform_1(%arg0: i32) -> (i32, i32) {
    %c0_i32 = arith.constant 0 : i32
    %c0_i32_0 = arith.constant 0 : i32
    %c0_i32_1 = arith.constant 0 : i32
    return %c0_i32, %c0_i32_0 : i32, i32
  }
  func.func @transform_2(%arg0: i32) -> (i32, i32) {
    %c0_i32 = arith.constant 0 : i32
    %c0_i32_0 = arith.constant 0 : i32
    %c0_i32_1 = arith.constant 0 : i32
    return %c0_i32, %c0_i32_0 : i32, i32
  }
  func.func @transform_3(%arg0: i32) -> (i32, i32) {
    %c0_i32 = arith.constant 0 : i32
    %c0_i32_0 = arith.constant 0 : i32
    %c0_i32_1 = arith.constant 0 : i32
    return %c0_i32, %c0_i32_0 : i32, i32
  }
  func.func @transform_5(%arg0: i32) -> (i32, i32) {
    %c0_i32 = arith.constant 0 : i32
    %c0_i32_0 = arith.constant 0 : i32
    %c0_i32_1 = arith.constant 0 : i32
    return %c0_i32, %c0_i32_0 : i32, i32
  }
  func.func @transform_6(%arg0: i32) -> (i32, i32) {
    %c0_i32 = arith.constant 0 : i32
    %c0_i32_0 = arith.constant 0 : i32
    %c0_i32_1 = arith.constant 0 : i32
    return %c0_i32, %c0_i32_0 : i32, i32
  }
  func.func @transform_7(%arg0: i32) -> (i32, i32, i32) {
    %c0_i32 = arith.constant 0 : i32
    %c0_i32_0 = arith.constant 0 : i32
    %c0_i32_1 = arith.constant 0 : i32
    return %arg0, %c0_i32, %c0_i32_0 : i32, i32, i32
  }
  func.func @transform_8(%arg0: i32) -> (i32, i32, i32) {
    %c0_i32 = arith.constant 0 : i32
    %c0_i32_0 = arith.constant 0 : i32
    %c0_i32_1 = arith.constant 0 : i32
    return %arg0, %c0_i32, %c0_i32_0 : i32, i32, i32
  }
  func.func @transform_9(%arg0: i32) -> (i32, i32, i32) {
    %c0_i32 = arith.constant 0 : i32
    %c0_i32_0 = arith.constant 0 : i32
    %c0_i32_1 = arith.constant 0 : i32
    return %arg0, %c0_i32, %c0_i32_0 : i32, i32, i32
  }
  func.func @transform_10(%arg0: i32) -> (i32, i32, i32) {
    %c0_i32 = arith.constant 0 : i32
    %c0_i32_0 = arith.constant 0 : i32
    %c0_i32_1 = arith.constant 0 : i32
    return %arg0, %c0_i32, %c0_i32_0 : i32, i32, i32
  }
  func.func @transform_11(%arg0: i32) -> (i32, i32, i32) {
    %c0_i32 = arith.constant 0 : i32
    %c0_i32_0 = arith.constant 0 : i32
    %c0_i32_1 = arith.constant 0 : i32
    return %arg0, %c0_i32, %c0_i32_0 : i32, i32, i32
  }
  func.func @transform_12(%arg0: i32) -> (i32, i32, i32) {
    %c0_i32 = arith.constant 0 : i32
    %c0_i32_0 = arith.constant 0 : i32
    %c0_i32_1 = arith.constant 0 : i32
    return %arg0, %c0_i32, %c0_i32_0 : i32, i32, i32
  }
  func.func @transform_13(%arg0: i32) -> (i32, i32) {
    %c0_i32 = arith.constant 0 : i32
    %c0_i32_0 = arith.constant 0 : i32
    %c0_i32_1 = arith.constant 0 : i32
    return %c0_i32, %c0_i32_0 : i32, i32
  }
  func.func @transform_14(%arg0: i32) -> (i32, i32) {
    %c0_i32 = arith.constant 0 : i32
    %c0_i32_0 = arith.constant 0 : i32
    %c0_i32_1 = arith.constant 0 : i32
    return %c0_i32, %c0_i32_0 : i32, i32
  }
  func.func @transform_15(%arg0: i32) -> (i32, i32) {
    %c0_i32 = arith.constant 0 : i32
    %c0_i32_0 = arith.constant 0 : i32
    %c0_i32_1 = arith.constant 0 : i32
    return %c0_i32, %c0_i32_0 : i32, i32
  }
}

</mosaic_0001>

<llo_original>
// kernel: tpu_custom_call.1
$region0: #{tpu_custom_call.1}
  #allocation0 [shape = 'u32[]', space=smem, size = 0x4, offset = 0x4, fixed_abs, tag = 'smem constant byte address 0x4 - core index']
  #allocation1 [shape = 'u32[144,128]{1,0:T(1,128)}', space=vmem, size = 0x12000, scoped, tag = 'internal scratch']
  #allocation2 [shape = 'f32[32,128]{1,0:T(8,128)}', space=vmem, size = 0x4000, scoped, tag = 'scratch operand']
  #allocation3 [shape = 'f32[1,1]{1,0:T(1,128)S(1)}', space=vmem, size = 0x200, scoped, tag = 'scoped memory for tpu_custom_call.1']
  #allocation10 [shape = 's32[]', space=sflag, size = 0x4, offset = 0, fixed_abs, tag = 'sflag constant byte address 0x0 - dummy sync flag']
  %s0 = inlined_call_operand.vmem [shape: f32[32,3], index: 0, kind: input, shape index: {}]
  %s1 = inlined_call_operand.vmem [shape: f32[64,4], index: 1, kind: input, shape index: {}]
  %s2 = inlined_call_operand.vmem [shape: bf16[64,32], index: 2, kind: input, shape index: {}]
  %s3 = inlined_call_operand.vmem [shape: bf16[32,64], index: 3, kind: input, shape index: {}]
  %s4 = inlined_call_operand.vmem [shape: bf16[2,32], index: 4, kind: input, shape index: {}]
  %s5 = inlined_call_operand.vmem [shape: f32[3,128], index: 5, kind: input, shape index: {}]
  %s6 = inlined_call_operand.vmem [shape: f32[1,128], index: 6, kind: input, shape index: {}]
  %s7 = inlined_call_operand.vmem [shape: f32[5,4,128], index: 7, kind: input, shape index: {}]
  %s8 = inlined_call_operand.vmem [shape: f32[5,1,128], index: 8, kind: input, shape index: {}]
  %s9 = inlined_call_operand.hbm [shape: bf16[5,128,256], index: 9, kind: input, shape index: {}]
  %s10 = inlined_call_operand.vmem [shape: f32[5,1,256], index: 10, kind: input, shape index: {}]
  %s11 = inlined_call_operand.hbm [shape: bf16[5,256,128], index: 11, kind: input, shape index: {}]
  %s12 = inlined_call_operand.vmem [shape: f32[5,1,128], index: 12, kind: input, shape index: {}]
  %s13 = inlined_call_operand.vmem [shape: f32[128,1], index: 13, kind: input, shape index: {}]
  %s14 = inlined_call_operand.<no memory space> [shape: f32[1,1], index: 14, kind: input, shape index: {}]
  %s15 = inlined_call_operand.vmem [shape: f32[2,1], index: 15, kind: output, shape index: {}]
  %s16 = sld [smem:[#allocation0]]
  $region140: #{tpu_custom_call.1} parent=0
    _
  %s18 = ssub.s32 1, %s16
  %s19 = scalar_select 0, %s18, %s16
  %v20 = vstv %s14
  %21 = vst [vmem:[#allocation3] sm:$0x1] %v20
  $region1: #{tpu_custom_call.1} parent=0
    #allocation4 [shape = 'u8[131072]{0}', space=vmem, size = 0x20000, scoped, tag = 'input window, operand 9']
    #allocation5 [shape = 's32[2]{0}', space=sflag, size = 0x8, scoped, tag = 'scoped memory for tpu_custom_call.1']
    #allocation6 [shape = 'u8[131072]{0}', space=vmem, size = 0x20000, scoped, tag = 'input window, operand 11']
    #allocation7 [shape = 's32[2]{0}', space=sflag, size = 0x8, scoped, tag = 'scoped memory for tpu_custom_call.1']
    %22 = vsyncpa [#allocation5], 0
    %s23 = scalar_lea.sflag [#allocation5], 1
    %24 = vsyncpa %s23, 0
    %25 = vsyncpa [#allocation7], 0
    %s26 = scalar_lea.sflag [#allocation7], 1
    %27 = vsyncpa %s26, 0
    loop: start=0, step=1, limit=7
    $region2: #{tpu_custom_call.1} parent=1 // loop_pre_header
      _
    $region3: #{tpu_custom_call.1} parent=1 // loop_header
      %s29 = sphi 0, %s33
      %p30 = scmp.ge.s32.totalorder %s29, 7
      %s37 = sphi 0, %s37
      %s39 = sphi 0, %s37
      %s40 = sphi 0, %s39
      %s54 = sphi 0, %s40
      %s58 = sphi 0, %s58
      %s60 = sphi 0, %s58
      %s61 = sphi 0, %s60
      %s75 = sphi 0, %s61
      %s79 = sphi 0, %s79
      %s81 = sphi 0, %s79
      %s82 = sphi 0, %s81
      %s96 = sphi 0, %s82
      %s100 = sphi 0, %s100
      %s102 = sphi 0, %s100
      %s103 = sphi 0, %s102
      %s117 = sphi 0, %s103
      %s121 = sphi 0, %s121
      %s123 = sphi 0, %s121
      %s124 = sphi 0, %s123
      %s138 = sphi 0, %s124
      %s142 = sphi 0, %s142
      %s144 = sphi 0, %s142
      %s145 = sphi 0, %s144
      %s159 = sphi 0, %s145
      %s165 = sphi 0, %s167
      %s168 = sphi 0, %s165
      %s169 = sphi 0, %s168
      %s185 = sphi 0, %s169
      %s191 = sphi 0, %s193
      %s194 = sphi 0, %s191
      %s195 = sphi 0, %s194
      %s211 = sphi 0, %s195
      %s217 = sphi 0, %s219
      %s220 = sphi 0, %s217
      %s221 = sphi 0, %s220
      %s237 = sphi 0, %s221
      %s243 = sphi 0, %s245
      %s246 = sphi 0, %s243
      %s247 = sphi 0, %s246
      %s263 = sphi 0, %s247
      %s269 = sphi 0, %s271
      %s272 = sphi 0, %s269
      %s273 = sphi 0, %s272
      %s289 = sphi 0, %s273
      %s295 = sphi 0, %s297
      %s298 = sphi 0, %s295
      %s299 = sphi 0, %s298
      %s315 = sphi 0, %s299
      %s319 = sphi 0, %s319
      %s321 = sphi 0, %s319
      %s322 = sphi 0, %s321
      %s336 = sphi 0, %s322
      %s340 = sphi 0, %s340
      %s342 = sphi 0, %s340
      %s343 = sphi 0, %s342
      %s357 = sphi 0, %s343
      %s361 = sphi 0, %s361
      %s363 = sphi 0, %s361
      %s364 = sphi 0, %s363
      %s378 = sphi 0, %s364
    $region4: #{tpu_custom_call.1} parent=1 // loop_header_branch
      %32 = sbr.rel (%p30) target = $region8
    $region5: #{tpu_custom_call.1} parent=1 // loop_body
      %s34 = ssub.s32 %s29, 1
      %s35 = ssub.s32 %s29, 2
      %s36 = sadd.s32 %s29, 1
      %s38 = sadd.s32 %s37, 1
      %p41 = scmp.eq.s32.totalorder %s29, 4
      %p42 = scmp.ne.s32.totalorder %s37, %s39
      %p43 = scmp.eq.s32.totalorder %s29, 0
      %p44 = por %p42, %p43
      %p45 = scmp.ne.s32.totalorder %s37, %s39
      %p46 = scmp.eq.s32.totalorder %s34, 4
      %p47 = por %p45, %p46
      %p48 = scmp.ne.s32.totalorder %s39, %s40
      %p49 = scmp.eq.s32.totalorder %s34, 0
      %p50 = por %p48, %p49
      %p51 = scmp.ne.s32.totalorder %s39, %s40
      %p52 = scmp.eq.s32.totalorder %s35, 4
      %p53 = por %p51, %p52
      %p55 = scmp.ne.s32.totalorder %s40, %s54
      %p56 = scmp.eq.s32.totalorder %s35, 0
      %p57 = por %p55, %p56
      %s59 = sadd.s32 %s58, 1
      %p62 = scmp.eq.s32.totalorder %s29, 4
      %p63 = scmp.ne.s32.totalorder %s58, %s60
      %p64 = scmp.eq.s32.totalorder %s29, 0
      %p65 = por %p63, %p64
      %p66 = scmp.ne.s32.totalorder %s58, %s60
      %p67 = scmp.eq.s32.totalorder %s34, 4
      %p68 = por %p66, %p67
      %p69 = scmp.ne.s32.totalorder %s60, %s61
      %p70 = scmp.eq.s32.totalorder %s34, 0
      %p71 = por %p69, %p70
      %p72 = scmp.ne.s32.totalorder %s60, %s61
      %p73 = scmp.eq.s32.totalorder %s35, 4
      %p74 = por %p72, %p73
      %p76 = scmp.ne.s32.totalorder %s61, %s75
      %p77 = scmp.eq.s32.totalorder %s35, 0
      %p78 = por %p76, %p77
      %s80 = sadd.s32 %s79, 1
      %p83 = scmp.eq.s32.totalorder %s29, 4
      %p84 = scmp.ne.s32.totalorder %s79, %s81
      %p85 = scmp.eq.s32.totalorder %s29, 0
      %p86 = por %p84, %p85
      %p87 = scmp.ne.s32.totalorder %s79, %s81
      %p88 = scmp.eq.s32.totalorder %s34, 4
      %p89 = por %p87, %p88
      %p90 = scmp.ne.s32.totalorder %s81, %s82
      %p91 = scmp.eq.s32.totalorder %s34, 0
      %p92 = por %p90, %p91
      %p93 = scmp.ne.s32.totalorder %s81, %s82
      %p94 = scmp.eq.s32.totalorder %s35, 4
      %p95 = por %p93, %p94
      %p97 = scmp.ne.s32.totalorder %s82, %s96
      %p98 = scmp.eq.s32.totalorder %s35, 0
      %p99 = por %p97, %p98
      %s101 = sadd.s32 %s100, 1
      %p104 = scmp.eq.s32.totalorder %s29, 4
      %p105 = scmp.ne.s32.totalorder %s100, %s102
      %p106 = scmp.eq.s32.totalorder %s29, 0
      %p107 = por %p105, %p106
      %p108 = scmp.ne.s32.totalorder %s100, %s102
      %p109 = scmp.eq.s32.totalorder %s34, 4
      %p110 = por %p108, %p109
      %p111 = scmp.ne.s32.totalorder %s102, %s103
      %p112 = scmp.eq.s32.totalorder %s34, 0
      %p113 = por %p111, %p112
      %p114 = scmp.ne.s32.totalorder %s102, %s103
      %p115 = scmp.eq.s32.totalorder %s35, 4
      %p116 = por %p114, %p115
      %p118 = scmp.ne.s32.totalorder %s103, %s117
      %p119 = scmp.eq.s32.totalorder %s35, 0
      %p120 = por %p118, %p119
      %s122 = sadd.s32 %s121, 1
      %p125 = scmp.eq.s32.totalorder %s29, 4
      %p126 = scmp.ne.s32.totalorder %s121, %s123
      %p127 = scmp.eq.s32.totalorder %s29, 0
      %p128 = por %p126, %p127
      %p129 = scmp.ne.s32.totalorder %s121, %s123
      %p130 = scmp.eq.s32.totalorder %s34, 4
      %p131 = por %p129, %p130
      %p132 = scmp.ne.s32.totalorder %s123, %s124
      %p133 = scmp.eq.s32.totalorder %s34, 0
      %p134 = por %p132, %p133
      %p135 = scmp.ne.s32.totalorder %s123, %s124
      %p136 = scmp.eq.s32.totalorder %s35, 4
      %p137 = por %p135, %p136
      %p139 = scmp.ne.s32.totalorder %s124, %s138
      %p140 = scmp.eq.s32.totalorder %s35, 0
      %p141 = por %p139, %p140
      %s143 = sadd.s32 %s142, 1
      %p146 = scmp.eq.s32.totalorder %s29, 4
      %p147 = scmp.ne.s32.totalorder %s142, %s144
      %p148 = scmp.eq.s32.totalorder %s29, 0
      %p149 = por %p147, %p148
      %p150 = scmp.ne.s32.totalorder %s142, %s144
      %p151 = scmp.eq.s32.totalorder %s34, 4
      %p152 = por %p150, %p151
      %p153 = scmp.ne.s32.totalorder %s144, %s145
      %p154 = scmp.eq.s32.totalorder %s34, 0
      %p155 = por %p153, %p154
      %p156 = scmp.ne.s32.totalorder %s144, %s145
      %p157 = scmp.eq.s32.totalorder %s35, 4
      %p158 = por %p156, %p157
      %p160 = scmp.ne.s32.totalorder %s145, %s159
      %p161 = scmp.eq.s32.totalorder %s35, 0
      %p162 = por %p160, %p161
      %s163 = ssub.s32 %s29, %s36
      %p164 = scmp.eq.s32.totalorder %s163, 0
      %s166 = sadd.s32 %s165, 1
      %s167 = scalar_select %p164, %s165, %s166
      %p170 = pneg %p164
      %p171 = scmp.eq.s32.totalorder %s29, 4
      %p172 = por %p170, %p171
      %p173 = scmp.ne.s32.totalorder %s165, %s168
      %p174 = scmp.eq.s32.totalorder %s29, 0
      %p175 = por %p173, %p174
      %p176 = scmp.ne.s32.totalorder %s165, %s168
      %p177 = scmp.eq.s32.totalorder %s34, 4
      %p178 = por %p176, %p177
      %p179 = scmp.ne.s32.totalorder %s168, %s169
      %p180 = scmp.eq.s32.totalorder %s34, 0
      %p181 = por %p179, %p180
      %p182 = scmp.ne.s32.totalorder %s168, %s169
      %p183 = scmp.eq.s32.totalorder %s35, 4
      %p184 = por %p182, %p183
      %p186 = scmp.ne.s32.totalorder %s169, %s185
      %p187 = scmp.eq.s32.totalorder %s35, 0
      %p188 = por %p186, %p187
      %s189 = ssub.s32 %s29, %s36
      %p190 = scmp.eq.s32.totalorder %s189, 0
      %s192 = sadd.s32 %s191, 1
      %s193 = scalar_select %p190, %s191, %s192
      %p196 = pneg %p190
      %p197 = scmp.eq.s32.totalorder %s29, 4
      %p198 = por %p196, %p197
      %p199 = scmp.ne.s32.totalorder %s191, %s194
      %p200 = scmp.eq.s32.totalorder %s29, 0
      %p201 = por %p199, %p200
      %p202 = scmp.ne.s32.totalorder %s191, %s194
      %p203 = scmp.eq.s32.totalorder %s34, 4
      %p204 = por %p202, %p203
      %p205 = scmp.ne.s32.totalorder %s194, %s195
      %p206 = scmp.eq.s32.totalorder %s34, 0
      %p207 = por %p205, %p206
      %p208 = scmp.ne.s32.totalorder %s194, %s195
      %p209 = scmp.eq.s32.totalorder %s35, 4
      %p210 = por %p208, %p209
      %p212 = scmp.ne.s32.totalorder %s195, %s211
      %p213 = scmp.eq.s32.totalorder %s35, 0
      %p214 = por %p212, %p213
      %s215 = ssub.s32 %s29, %s36
      %p216 = scmp.eq.s32.totalorder %s215, 0
      %s218 = sadd.s32 %s217, 1
      %s219 = scalar_select %p216, %s217, %s218
      %p222 = pneg %p216
      %p223 = scmp.eq.s32.totalorder %s29, 4
      %p224 = por %p222, %p223
      %p225 = scmp.ne.s32.totalorder %s217, %s220
      %p226 = scmp.eq.s32.totalorder %s29, 0
      %p227 = por %p225, %p226
      %p228 = scmp.ne.s32.totalorder %s217, %s220
      %p229 = scmp.eq.s32.totalorder %s34, 4
      %p230 = por %p228, %p229
      %p231 = scmp.ne.s32.totalorder %s220, %s221
      %p232 = scmp.eq.s32.totalorder %s34, 0
      %p233 = por %p231, %p232
      %p234 = scmp.ne.s32.totalorder %s220, %s221
      %p235 = scmp.eq.s32.totalorder %s35, 4
      %p236 = por %p234, %p235
      %p238 = scmp.ne.s32.totalorder %s221, %s237
      %p239 = scmp.eq.s32.totalorder %s35, 0
      %p240 = por %p238, %p239
      %s241 = ssub.s32 %s29, %s36
      %p242 = scmp.eq.s32.totalorder %s241, 0
      %s244 = sadd.s32 %s243, 1
      %s245 = scalar_select %p242, %s243, %s244
      %p248 = pneg %p242
      %p249 = scmp.eq.s32.totalorder %s29, 4
      %p250 = por %p248, %p249
      %p251 = scmp.ne.s32.totalorder %s243, %s246
      %p252 = scmp.eq.s32.totalorder %s29, 0
      %p253 = por %p251, %p252
      %p254 = scmp.ne.s32.totalorder %s243, %s246
      %p255 = scmp.eq.s32.totalorder %s34, 4
      %p256 = por %p254, %p255
      %p257 = scmp.ne.s32.totalorder %s246, %s247
      %p258 = scmp.eq.s32.totalorder %s34, 0
      %p259 = por %p257, %p258
      %p260 = scmp.ne.s32.totalorder %s246, %s247
      %p261 = scmp.eq.s32.totalorder %s35, 4
      %p262 = por %p260, %p261
      %p264 = scmp.ne.s32.totalorder %s247, %s263
      %p265 = scmp.eq.s32.totalorder %s35, 0
      %p266 = por %p264, %p265
      %s267 = ssub.s32 %s29, %s36
      %p268 = scmp.eq.s32.totalorder %s267, 0
      %s270 = sadd.s32 %s269, 1
      %s271 = scalar_select %p268, %s269, %s270
      %p274 = pneg %p268
      %p275 = scmp.eq.s32.totalorder %s29, 4
      %p276 = por %p274, %p275
      %p277 = scmp.ne.s32.totalorder %s269, %s272
      %p278 = scmp.eq.s32.totalorder %s29, 0
      %p279 = por %p277, %p278
      %p280 = scmp.ne.s32.totalorder %s269, %s272
      %p281 = scmp.eq.s32.totalorder %s34, 4
      %p282 = por %p280, %p281
      %p283 = scmp.ne.s32.totalorder %s272, %s273
      %p284 = scmp.eq.s32.totalorder %s34, 0
      %p285 = por %p283, %p284
      %p286 = scmp.ne.s32.totalorder %s272, %s273
      %p287 = scmp.eq.s32.totalorder %s35, 4
      %p288 = por %p286, %p287
      %p290 = scmp.ne.s32.totalorder %s273, %s289
      %p291 = scmp.eq.s32.totalorder %s35, 0
      %p292 = por %p290, %p291
      %s293 = ssub.s32 %s29, %s36
      %p294 = scmp.eq.s32.totalorder %s293, 0
      %s296 = sadd.s32 %s295, 1
      %s297 = scalar_select %p294, %s295, %s296
      %p300 = pneg %p294
      %p301 = scmp.eq.s32.totalorder %s29, 4
      %p302 = por %p300, %p301
      %p303 = scmp.ne.s32.totalorder %s295, %s298
      %p304 = scmp.eq.s32.totalorder %s29, 0
      %p305 = por %p303, %p304
      %p306 = scmp.ne.s32.totalorder %s295, %s298
      %p307 = scmp.eq.s32.totalorder %s34, 4
      %p308 = por %p306, %p307
      %p309 = scmp.ne.s32.totalorder %s298, %s299
      %p310 = scmp.eq.s32.totalorder %s34, 0
      %p311 = por %p309, %p310
      %p312 = scmp.ne.s32.totalorder %s298, %s299
      %p313 = scmp.eq.s32.totalorder %s35, 4
      %p314 = por %p312, %p313
      %p316 = scmp.ne.s32.totalorder %s299, %s315
      %p317 = scmp.eq.s32.totalorder %s35, 0
      %p318 = por %p316, %p317
      %s320 = sadd.s32 %s319, 1
      %p323 = scmp.eq.s32.totalorder %s29, 4
      %p324 = scmp.ne.s32.totalorder %s319, %s321
      %p325 = scmp.eq.s32.totalorder %s29, 0
      %p326 = por %p324, %p325
      %p327 = scmp.ne.s32.totalorder %s319, %s321
      %p328 = scmp.eq.s32.totalorder %s34, 4
      %p329 = por %p327, %p328
      %p330 = scmp.ne.s32.totalorder %s321, %s322
      %p331 = scmp.eq.s32.totalorder %s34, 0
      %p332 = por %p330, %p331
      %p333 = scmp.ne.s32.totalorder %s321, %s322
      %p334 = scmp.eq.s32.totalorder %s35, 4
      %p335 = por %p333, %p334
      %p337 = scmp.ne.s32.totalorder %s322, %s336
      %p338 = scmp.eq.s32.totalorder %s35, 0
      %p339 = por %p337, %p338
      %s341 = sadd.s32 %s340, 1
      %p344 = scmp.eq.s32.totalorder %s29, 4
      %p345 = scmp.ne.s32.totalorder %s340, %s342
      %p346 = scmp.eq.s32.totalorder %s29, 0
      %p347 = por %p345, %p346
      %p348 = scmp.ne.s32.totalorder %s340, %s342
      %p349 = scmp.eq.s32.totalorder %s34, 4
      %p350 = por %p348, %p349
      %p351 = scmp.ne.s32.totalorder %s342, %s343
      %p352 = scmp.eq.s32.totalorder %s34, 0
      %p353 = por %p351, %p352
      %p354 = scmp.ne.s32.totalorder %s342, %s343
      %p355 = scmp.eq.s32.totalorder %s35, 4
      %p356 = por %p354, %p355
      %p358 = scmp.ne.s32.totalorder %s343, %s357
      %p359 = scmp.eq.s32.totalorder %s35, 0
      %p360 = por %p358, %p359
      %s362 = sadd.s32 %s361, 1
      %p365 = scmp.eq.s32.totalorder %s29, 4
      %p366 = scmp.ne.s32.totalorder %s361, %s363
      %p367 = scmp.eq.s32.totalorder %s29, 0
      %p368 = por %p366, %p367
      %p369 = scmp.ne.s32.totalorder %s361, %s363
      %p370 = scmp.eq.s32.totalorder %s34, 4
      %p371 = por %p369, %p370
      %p372 = scmp.ne.s32.totalorder %s363, %s364
      %p373 = scmp.eq.s32.totalorder %s34, 0
      %p374 = por %p372, %p373
      %p375 = scmp.ne.s32.totalorder %s363, %s364
      %p376 = scmp.eq.s32.totalorder %s35, 4
      %p377 = por %p375, %p376
      %p379 = scmp.ne.s32.totalorder %s364, %s378
      %p380 = scmp.eq.s32.totalorder %s35, 0
      %p381 = por %p379, %p380
      %p382 = scmp.le.s32.totalorder 1, %s29
      %p383 = scmp.lt.s32.totalorder %s29, 6
      %p384 = pnand %p382, %p383
      %p385 = pneg %p384
      // Predicated region
      $region9: #{tpu_custom_call.1} parent=5 // pred_check
        _
      $region10: #{tpu_custom_call.1} parent=5 // pred_check_branch
        %387 = sbr.rel (%p384) target = $region12
      $region11: #{tpu_custom_call.1} parent=5 // pred_region
        %s388 = ssub.s32 %s29, 1
        // Predicated region
        $region13: #{tpu_custom_call.1} parent=11 // pred_check
          %p389 = pneg %p50
        $region14: #{tpu_custom_call.1} parent=11 // pred_check_branch
          %391 = sbr.rel (%p389) target = $region16
        $region15: #{tpu_custom_call.1} parent=11 // pred_region
          _
        $region16: #{tpu_custom_call.1} parent=11 // pred_fallthru
          _
        // Predicated region
        $region17: #{tpu_custom_call.1} parent=11 // pred_check
          %p392 = pneg %p71
        $region18: #{tpu_custom_call.1} parent=11 // pred_check_branch
          %394 = sbr.rel (%p392) target = $region20
        $region19: #{tpu_custom_call.1} parent=11 // pred_region
          _
        $region20: #{tpu_custom_call.1} parent=11 // pred_fallthru
          _
        // Predicated region
        $region21: #{tpu_custom_call.1} parent=11 // pred_check
          %p395 = pneg %p92
        $region22: #{tpu_custom_call.1} parent=11 // pred_check_branch
          %397 = sbr.rel (%p395) target = $region24
        $region23: #{tpu_custom_call.1} parent=11 // pred_region
          _
        $region24: #{tpu_custom_call.1} parent=11 // pred_fallthru
          _
        // Predicated region
        $region25: #{tpu_custom_call.1} parent=11 // pred_check
          %p398 = pneg %p113
        $region26: #{tpu_custom_call.1} parent=11 // pred_check_branch
          %400 = sbr.rel (%p398) target = $region28
        $region27: #{tpu_custom_call.1} parent=11 // pred_region
          _
        $region28: #{tpu_custom_call.1} parent=11 // pred_fallthru
          _
        // Predicated region
        $region29: #{tpu_custom_call.1} parent=11 // pred_check
          %p401 = pneg %p134
        $region30: #{tpu_custom_call.1} parent=11 // pred_check_branch
          %403 = sbr.rel (%p401) target = $region32
        $region31: #{tpu_custom_call.1} parent=11 // pred_region
          _
        $region32: #{tpu_custom_call.1} parent=11 // pred_fallthru
          _
        // Predicated region
        $region33: #{tpu_custom_call.1} parent=11 // pred_check
          %p404 = pneg %p155
        $region34: #{tpu_custom_call.1} parent=11 // pred_check_branch
          %406 = sbr.rel (%p404) target = $region36
        $region35: #{tpu_custom_call.1} parent=11 // pred_region
          _
        $region36: #{tpu_custom_call.1} parent=11 // pred_fallthru
          _
        // Predicated region
        $region37: #{tpu_custom_call.1} parent=11 // pred_check
          %p407 = pneg %p332
        $region38: #{tpu_custom_call.1} parent=11 // pred_check_branch
          %409 = sbr.rel (%p407) target = $region40
        $region39: #{tpu_custom_call.1} parent=11 // pred_region
          _
        $region40: #{tpu_custom_call.1} parent=11 // pred_fallthru
          _
        // Predicated region
        $region41: #{tpu_custom_call.1} parent=11 // pred_check
          %p410 = pneg %p353
        $region42: #{tpu_custom_call.1} parent=11 // pred_check_branch
          %412 = sbr.rel (%p410) target = $region44
        $region43: #{tpu_custom_call.1} parent=11 // pred_region
          _
        $region44: #{tpu_custom_call.1} parent=11 // pred_fallthru
          _
      $region12: #{tpu_custom_call.1} parent=5 // pred_fallthru
        _
      %p413 = scmp.lt.s32.totalorder %s29, 5
      // Predicated region
      $region45: #{tpu_custom_call.1} parent=5 // pred_check
        %p414 = pneg %p413
      $region46: #{tpu_custom_call.1} parent=5 // pred_check_branch
        %416 = sbr.rel (%p414) target = $region48
      $region47: #{tpu_custom_call.1} parent=5 // pred_region
        // Predicated region
        $region49: #{tpu_custom_call.1} parent=47 // pred_check
          %p417 = pneg %p175
        $region50: #{tpu_custom_call.1} parent=47 // pred_check_branch
          %419 = sbr.rel (%p417) target = $region52
        $region51: #{tpu_custom_call.1} parent=47 // pred_region
          %p420 = scmp.lt.s32.totalorder %s29, 4
          %s421 = scalar_select %p420, %s29, 4
          %s422 = smul.addr %s421, 4
          %s423 = scalar_lea.vmem %s7, %s422
        $region52: #{tpu_custom_call.1} parent=47 // pred_fallthru
          _
        // Predicated region
        $region53: #{tpu_custom_call.1} parent=47 // pred_check
          %p424 = pneg %p201
        $region54: #{tpu_custom_call.1} parent=47 // pred_check_branch
          %426 = sbr.rel (%p424) target = $region56
        $region55: #{tpu_custom_call.1} parent=47 // pred_region
          %p427 = scmp.lt.s32.totalorder %s29, 4
          %s428 = scalar_select %p427, %s29, 4
          %s429 = scalar_lea.vmem %s8, %s428
        $region56: #{tpu_custom_call.1} parent=47 // pred_fallthru
          _
        // Predicated region
        $region57: #{tpu_custom_call.1} parent=47 // pred_check
          %p430 = pneg %p227
        $region58: #{tpu_custom_call.1} parent=47 // pred_check_branch
          %432 = sbr.rel (%p430) target = $region60
        $region59: #{tpu_custom_call.1} parent=47 // pred_region
          %s433 = sand.u32 %s217, 1
          %s434 = scalar_lea.sflag [#allocation5], %s433
          %s435 = sand.u32 %s217, 1
          %s436 = smul.addr %s435, 128
          %s437 = scalar_lea.vmem [#allocation4], %s436
          %s439 = ssub.s32 2048, 2048
          %440 = vsyncadd %s434, %s439
          %s441 = smul.addr %s29, 32
          %s442 = smul.addr %s441, 64
          %s443 = scalar_lea.hbm %s9, %s442
          %s444 = sshll.u32 %s437, 4
          %s445 = int_to_ptr.vmem [resolvable:$true] %s444
          %450 = dma.hbm_to_vmem [thread:$0]  %s443, 2048, %s445, %s434, 128, 128, 8
        $region60: #{tpu_custom_call.1} parent=47 // pred_fallthru
          _
        // Predicated region
        $region61: #{tpu_custom_call.1} parent=47 // pred_check
          %p451 = pneg %p253
        $region62: #{tpu_custom_call.1} parent=47 // pred_check_branch
          %453 = sbr.rel (%p451) target = $region64
        $region63: #{tpu_custom_call.1} parent=47 // pred_region
          %p454 = scmp.lt.s32.totalorder %s29, 4
          %s455 = scalar_select %p454, %s29, 4
          %s456 = smul.addr %s455, 2
          %s457 = scalar_lea.vmem %s10, %s456
        $region64: #{tpu_custom_call.1} parent=47 // pred_fallthru
          _
        // Predicated region
        $region65: #{tpu_custom_call.1} parent=47 // pred_check
          %p458 = pneg %p279
        $region66: #{tpu_custom_call.1} parent=47 // pred_check_branch
          %460 = sbr.rel (%p458) target = $region68
        $region67: #{tpu_custom_call.1} parent=47 // pred_region
          %s461 = sand.u32 %s269, 1
          %s462 = scalar_lea.sflag [#allocation7], %s461
          %s463 = sand.u32 %s269, 1
          %s464 = smul.addr %s463, 128
          %s465 = scalar_lea.vmem [#allocation6], %s464
          %s467 = ssub.s32 2048, 2048
          %468 = vsyncadd %s462, %s467
          %s469 = smul.addr %s29, 32
          %s470 = smul.addr %s469, 64
          %s471 = scalar_lea.hbm %s11, %s470
          %s472 = sshll.u32 %s465, 4
          %s473 = int_to_ptr.vmem [resolvable:$true] %s472
          %478 = dma.hbm_to_vmem [thread:$0]  %s471, 2048, %s473, %s462, 64, 64, 4
        $region68: #{tpu_custom_call.1} parent=47 // pred_fallthru
          _
        // Predicated region
        $region69: #{tpu_custom_call.1} parent=47 // pred_check
          %p479 = pneg %p305
        $region70: #{tpu_custom_call.1} parent=47 // pred_check_branch
          %481 = sbr.rel (%p479) target = $region72
        $region71: #{tpu_custom_call.1} parent=47 // pred_region
          %p482 = scmp.lt.s32.totalorder %s29, 4
          %s483 = scalar_select %p482, %s29, 4
          %s484 = scalar_lea.vmem %s12, %s483
        $region72: #{tpu_custom_call.1} parent=47 // pred_fallthru
          _
      $region48: #{tpu_custom_call.1} parent=5 // pred_fallthru
        _
      %p485 = scmp.le.s32.totalorder 1, %s29
      %p486 = scmp.lt.s32.totalorder %s29, 6
      %p487 = pnand %p485, %p486
      %p488 = pneg %p487
      // Predicated region
      $region73: #{tpu_custom_call.1} parent=5 // pred_check
        _
      $region74: #{tpu_custom_call.1} parent=5 // pred_check_branch
        %490 = sbr.rel (%p487) target = $region76
      $region75: #{tpu_custom_call.1} parent=5 // pred_region
        %s491 = ssub.s32 %s29, 1
        %s492 = sand.u32 %s220, 1
        %s493 = scalar_lea.sflag [#allocation5], %s492
        %s494 = sand.u32 %s220, 1
        %s495 = smul.addr %s494, 128
        %s496 = scalar_lea.vmem [#allocation4], %s495
        // Predicated region
        $region77: #{tpu_custom_call.1} parent=75 // pred_check
          %p497 = pneg %p233
        $region78: #{tpu_custom_call.1} parent=75 // pred_check_branch
          %499 = sbr.rel (%p497) target = $region80
        $region79: #{tpu_custom_call.1} parent=75 // pred_region
          %500 = dma.done %s493, 2048
        $region80: #{tpu_custom_call.1} parent=75 // pred_fallthru
          _
        %s501 = sand.u32 %s272, 1
        %s502 = scalar_lea.sflag [#allocation7], %s501
        %s503 = sand.u32 %s272, 1
        %s504 = smul.addr %s503, 128
        %s505 = scalar_lea.vmem [#allocation6], %s504
        // Predicated region
        $region81: #{tpu_custom_call.1} parent=75 // pred_check
          %p506 = pneg %p285
        $region82: #{tpu_custom_call.1} parent=75 // pred_check_branch
          %508 = sbr.rel (%p506) target = $region84
        $region83: #{tpu_custom_call.1} parent=75 // pred_region
          %509 = dma.done %s502, 2048
        $region84: #{tpu_custom_call.1} parent=75 // pred_fallthru
          _
        %p510 = pneg %p50
        %p511 = pneg %p47
        %p512 = pneg %p71
        %p513 = pneg %p68
        %p514 = pneg %p92
        %p515 = pneg %p89
        %p516 = pneg %p113
        %p517 = pneg %p110
        %p518 = pneg %p134
        %p519 = pneg %p131
        %p520 = pneg %p155
        %p521 = pneg %p152
        %p522 = scmp.lt.s32.totalorder %s34, 4
        %s523 = scalar_select %p522, %s34, 4
        %s524 = smul.addr %s523, 4
        %s525 = scalar_lea.vmem %s7, %s524
        %p526 = pneg %p181
        %p527 = pneg %p178
        %p528 = scmp.lt.s32.totalorder %s34, 4
        %s529 = scalar_select %p528, %s34, 4
        %s530 = scalar_lea.vmem %s8, %s529
        %p531 = pneg %p207
        %p532 = pneg %p204
        %s533 = sand.u32 %s220, 1
        %s534 = scalar_lea.sflag [#allocation5], %s533
        %s535 = sand.u32 %s220, 1
        %s536 = smul.addr %s535, 128
        %s537 = scalar_lea.vmem [#allocation4], %s536
        %p538 = pneg %p233
        %p539 = pneg %p230
        %p540 = scmp.lt.s32.totalorder %s34, 4
        %s541 = scalar_select %p540, %s34, 4
        %s542 = smul.addr %s541, 2
        %s543 = scalar_lea.vmem %s10, %s542
        %p544 = pneg %p259
        %p545 = pneg %p256
        %s546 = sand.u32 %s272, 1
        %s547 = scalar_lea.sflag [#allocation7], %s546
        %s548 = sand.u32 %s272, 1
        %s549 = smul.addr %s548, 128
        %s550 = scalar_lea.vmem [#allocation6], %s549
        %p551 = pneg %p285
        %p552 = pneg %p282
        %p553 = scmp.lt.s32.totalorder %s34, 4
        %s554 = scalar_select %p553, %s34, 4
        %s555 = scalar_lea.vmem %s12, %s554
        %p556 = pneg %p311
        %p557 = pneg %p308
        %p558 = pneg %p332
        %p559 = pneg %p329
        %p560 = pneg %p353
        %p561 = pneg %p350
        %p562 = pneg %p374
        %p563 = pneg %p371
        %p564 = scmp.lt.s32.totalorder %s34, 4
        %s565 = scalar_select %p564, %s34, 4
        %s566 = smul.addr %s565, 4
        %s567 = scalar_lea.vmem %s7, %s566
        %p568 = scmp.lt.s32.totalorder %s34, 4
        %s569 = scalar_select %p568, %s34, 4
        %s570 = scalar_lea.vmem %s8, %s569
        %p571 = scmp.lt.s32.totalorder %s34, 4
        %s572 = scalar_select %p571, %s34, 4
        %s573 = smul.addr %s572, 2
        %s574 = scalar_lea.vmem %s10, %s573
        %p575 = scmp.lt.s32.totalorder %s34, 4
        %s576 = scalar_select %p575, %s34, 4
        %s577 = scalar_lea.vmem %s12, %s576
        %p579 = scmp.eq.s32.totalorder %s34, 0
        // Predicated region
        $region85: #{tpu_custom_call.1} parent=75 // pred_check
          %p580 = pneg %p579
        $region86: #{tpu_custom_call.1} parent=75 // pred_check_branch
          %582 = sbr.rel (%p580) target = $region88
        $region87: #{tpu_custom_call.1} parent=75 // pred_region
          %v583 = vld [vmem:[%s0] sm:$0xff]
          %v584 = vld [vmem:[%s0 + $0x8] sm:$0xff]
          %v585 = vld [vmem:[%s0 + $0x10] sm:$0xff]
          %v586 = vld [vmem:[%s0 + $0x18] sm:$0xff]
          %v587 = vld [vmem:[%s5] sm:$0x7]
          %589 = vset.pattern.permute.xlu0 0
          %590 = vperm.xlu0 %589, %v583
          %v591 = vpop.permute.xlu0 %590
          %594 = vset.pattern.permute.xlu0 0
          %595 = vperm.xlu0 %594, %v584
          %v596 = vpop.permute.xlu0 %595
          %599 = vset.pattern.permute.xlu0 0
          %600 = vperm.xlu0 %599, %v585
          %v601 = vpop.permute.xlu0 %600
          %604 = vset.pattern.permute.xlu0 0
          %605 = vperm.xlu0 %604, %v586
          %v606 = vpop.permute.xlu0 %605
          %v608 = vlaneseq
          %v609 = vshrl.u32 %v608, 7
          %v610 = vsub.s32 0, %v609
          %v611 = vrot.slane %v587, %v610
          %v612 = vmul.f32 %v591, %v611
          %v613 = vmul.f32 %v596, %v611
          %v614 = vmul.f32 %v601, %v611
          %v615 = vmul.f32 %v606, %v611
          %616 = vset.pattern.permute.xlu0 1
          %617 = vperm.xlu0 %616, %v583
          %v618 = vpop.permute.xlu0 %617
          %620 = vset.pattern.permute.xlu0 1
          %621 = vperm.xlu0 %620, %v584
          %v622 = vpop.permute.xlu0 %621
          %624 = vset.pattern.permute.xlu0 1
          %625 = vperm.xlu0 %624, %v585
          %v626 = vpop.permute.xlu0 %625
          %628 = vset.pattern.permute.xlu0 1
          %629 = vperm.xlu0 %628, %v586
          %v630 = vpop.permute.xlu0 %629
          %v632 = vlaneseq
          %v633 = vshrl.u32 %v632, 7
          %v634 = vsub.s32 1, %v633
          %v635 = vrot.slane %v587, %v634
          %v636 = vmul.f32 %v618, %v635
          %v637 = vmul.f32 %v622, %v635
          %v638 = vmul.f32 %v626, %v635
          %v639 = vmul.f32 %v630, %v635
          %v640 = vadd.f32 %v612, %v636
          %v641 = vadd.f32 %v613, %v637
          %v642 = vadd.f32 %v614, %v638
          %v643 = vadd.f32 %v615, %v639
          %644 = vset.pattern.permute.xlu0 2
          %645 = vperm.xlu0 %644, %v583
          %v646 = vpop.permute.xlu0 %645
          %648 = vset.pattern.permute.xlu0 2
          %649 = vperm.xlu0 %648, %v584
          %v650 = vpop.permute.xlu0 %649
          %652 = vset.pattern.permute.xlu0 2
          %653 = vperm.xlu0 %652, %v585
          %v654 = vpop.permute.xlu0 %653
          %656 = vset.pattern.permute.xlu0 2
          %657 = vperm.xlu0 %656, %v586
          %v658 = vpop.permute.xlu0 %657
          %v660 = vlaneseq
          %v661 = vshrl.u32 %v660, 7
          %v662 = vsub.s32 2, %v661
          %v663 = vrot.slane %v587, %v662
          %v664 = vmul.f32 %v646, %v663
          %v665 = vmul.f32 %v650, %v663
          %v666 = vmul.f32 %v654, %v663
          %v667 = vmul.f32 %v658, %v663
          %v668 = vadd.f32 %v640, %v664
          %v669 = vadd.f32 %v641, %v665
          %v670 = vadd.f32 %v642, %v666
          %v671 = vadd.f32 %v643, %v667
          %v672 = vld [vmem:[%s6] sm:$0x1]
          %v674 = vlaneseq
          %v675 = vshrl.u32 %v674, 7
          %v676 = vsub.s32 0, %v675
          %v677 = vrot.slane %v672, %v676
          %v679 = vadd.f32 %v668, %v677
          %v680 = vadd.f32 %v669, %v677
          %v681 = vadd.f32 %v670, %v677
          %v682 = vadd.f32 %v671, %v677
          %683 = vst [vmem:[#allocation2] sm:$0xff] %v679
          %684 = vst [vmem:[#allocation2 + $0x8] sm:$0xff] %v680
          %685 = vst [vmem:[#allocation2 + $0x10] sm:$0xff] %v681
          %686 = vst [vmem:[#allocation2 + $0x18] sm:$0xff] %v682
        $region88: #{tpu_custom_call.1} parent=75 // pred_fallthru
          _
        %v687 = vld [vmem:[#allocation2] sm:$0xff]
        %v688 = vld [vmem:[#allocation2 + $0x8] sm:$0xff]
        %v689 = vld [vmem:[#allocation2 + $0x10] sm:$0xff]
        %v690 = vld [vmem:[#allocation2 + $0x18] sm:$0xff]
        %v691 = vld [vmem:[%s1] sm:$0xff]
        %v692 = vld [vmem:[%s1 + $0x8] sm:$0xff]
        %v693 = vld [vmem:[%s1 + $0x10] sm:$0xff]
        %v694 = vld [vmem:[%s1 + $0x18] sm:$0xff]
        %v695 = vld [vmem:[%s1 + $0x20] sm:$0xff]
        %v696 = vld [vmem:[%s1 + $0x28] sm:$0xff]
        %v697 = vld [vmem:[%s1 + $0x30] sm:$0xff]
        %v698 = vld [vmem:[%s1 + $0x38] sm:$0xff]
        %v699 = vld [vmem:[%s567] sm:$0xf]
        %701 = vset.pattern.permute.xlu0 0
        %702 = vperm.xlu0 %701, %v691
        %v703 = vpop.permute.xlu0 %702
        %706 = vset.pattern.permute.xlu0 0
        %707 = vperm.xlu0 %706, %v692
        %v708 = vpop.permute.xlu0 %707
        %711 = vset.pattern.permute.xlu0 0
        %712 = vperm.xlu0 %711, %v693
        %v713 = vpop.permute.xlu0 %712
        %716 = vset.pattern.permute.xlu0 0
        %717 = vperm.xlu0 %716, %v694
        %v718 = vpop.permute.xlu0 %717
        %721 = vset.pattern.permute.xlu0 0
        %722 = vperm.xlu0 %721, %v695
        %v723 = vpop.permute.xlu0 %722
        %726 = vset.pattern.permute.xlu0 0
        %727 = vperm.xlu0 %726, %v696
        %v728 = vpop.permute.xlu0 %727
        %731 = vset.pattern.permute.xlu0 0
        %732 = vperm.xlu0 %731, %v697
        %v733 = vpop.permute.xlu0 %732
        %736 = vset.pattern.permute.xlu0 0
        %737 = vperm.xlu0 %736, %v698
        %v738 = vpop.permute.xlu0 %737
        %v740 = vlaneseq
        %v741 = vshrl.u32 %v740, 7
        %v742 = vsub.s32 0, %v741
        %v743 = vrot.slane %v699, %v742
        %v744 = vmul.f32 %v703, %v743
        %v745 = vmul.f32 %v708, %v743
        %v746 = vmul.f32 %v713, %v743
        %v747 = vmul.f32 %v718, %v743
        %v748 = vmul.f32 %v723, %v743
        %v749 = vmul.f32 %v728, %v743
        %v750 = vmul.f32 %v733, %v743
        %v751 = vmul.f32 %v738, %v743
        %752 = vset.pattern.permute.xlu0 1
        %753 = vperm.xlu0 %752, %v691
        %v754 = vpop.permute.xlu0 %753
        %756 = vset.pattern.permute.xlu0 1
        %757 = vperm.xlu0 %756, %v692
        %v758 = vpop.permute.xlu0 %757
        %760 = vset.pattern.permute.xlu0 1
        %761 = vperm.xlu0 %760, %v693
        %v762 = vpop.permute.xlu0 %761
        %764 = vset.pattern.permute.xlu0 1
        %765 = vperm.xlu0 %764, %v694
        %v766 = vpop.permute.xlu0 %765
        %768 = vset.pattern.permute.xlu0 1
        %769 = vperm.xlu0 %768, %v695
        %v770 = vpop.permute.xlu0 %769
        %772 = vset.pattern.permute.xlu0 1
        %773 = vperm.xlu0 %772, %v696
        %v774 = vpop.permute.xlu0 %773
        %776 = vset.pattern.permute.xlu0 1
        %777 = vperm.xlu0 %776, %v697
        %v778 = vpop.permute.xlu0 %777
        %780 = vset.pattern.permute.xlu0 1
        %781 = vperm.xlu0 %780, %v698
        %v782 = vpop.permute.xlu0 %781
        %v784 = vlaneseq
        %v785 = vshrl.u32 %v784, 7
        %v786 = vsub.s32 1, %v785
        %v787 = vrot.slane %v699, %v786
        %v788 = vmul.f32 %v754, %v787
        %v789 = vmul.f32 %v758, %v787
        %v790 = vmul.f32 %v762, %v787
        %v791 = vmul.f32 %v766, %v787
        %v792 = vmul.f32 %v770, %v787
        %v793 = vmul.f32 %v774, %v787
        %v794 = vmul.f32 %v778, %v787
        %v795 = vmul.f32 %v782, %v787
        %v796 = vadd.f32 %v744, %v788
        %v797 = vadd.f32 %v745, %v789
        %v798 = vadd.f32 %v746, %v790
        %v799 = vadd.f32 %v747, %v791
        %v800 = vadd.f32 %v748, %v792
        %v801 = vadd.f32 %v749, %v793
        %v802 = vadd.f32 %v750, %v794
        %v803 = vadd.f32 %v751, %v795
        %804 = vset.pattern.permute.xlu0 2
        %805 = vperm.xlu0 %804, %v691
        %v806 = vpop.permute.xlu0 %805
        %808 = vset.pattern.permute.xlu0 2
        %809 = vperm.xlu0 %808, %v692
        %v810 = vpop.permute.xlu0 %809
        %812 = vset.pattern.permute.xlu0 2
        %813 = vperm.xlu0 %812, %v693
        %v814 = vpop.permute.xlu0 %813
        %816 = vset.pattern.permute.xlu0 2
        %817 = vperm.xlu0 %816, %v694
        %v818 = vpop.permute.xlu0 %817
        %820 = vset.pattern.permute.xlu0 2
        %821 = vperm.xlu0 %820, %v695
        %v822 = vpop.permute.xlu0 %821
        %824 = vset.pattern.permute.xlu0 2
        %825 = vperm.xlu0 %824, %v696
        %v826 = vpop.permute.xlu0 %825
        %828 = vset.pattern.permute.xlu0 2
        %829 = vperm.xlu0 %828, %v697
        %v830 = vpop.permute.xlu0 %829
        %832 = vset.pattern.permute.xlu0 2
        %833 = vperm.xlu0 %832, %v698
        %v834 = vpop.permute.xlu0 %833
        %v836 = vlaneseq
        %v837 = vshrl.u32 %v836, 7
        %v838 = vsub.s32 2, %v837
        %v839 = vrot.slane %v699, %v838
        %v840 = vmul.f32 %v806, %v839
        %v841 = vmul.f32 %v810, %v839
        %v842 = vmul.f32 %v814, %v839
        %v843 = vmul.f32 %v818, %v839
        %v844 = vmul.f32 %v822, %v839
        %v845 = vmul.f32 %v826, %v839
        %v846 = vmul.f32 %v830, %v839
        %v847 = vmul.f32 %v834, %v839
        %v848 = vadd.f32 %v796, %v840
        %v849 = vadd.f32 %v797, %v841
        %v850 = vadd.f32 %v798, %v842
        %v851 = vadd.f32 %v799, %v843
        %v852 = vadd.f32 %v800, %v844
        %v853 = vadd.f32 %v801, %v845
        %v854 = vadd.f32 %v802, %v846
        %v855 = vadd.f32 %v803, %v847
        %856 = vset.pattern.permute.xlu0 3
        %857 = vperm.xlu0 %856, %v691
        %v858 = vpop.permute.xlu0 %857
        %860 = vset.pattern.permute.xlu0 3
        %861 = vperm.xlu0 %860, %v692
        %v862 = vpop.permute.xlu0 %861
        %864 = vset.pattern.permute.xlu0 3
        %865 = vperm.xlu0 %864, %v693
        %v866 = vpop.permute.xlu0 %865
        %868 = vset.pattern.permute.xlu0 3
        %869 = vperm.xlu0 %868, %v694
        %v870 = vpop.permute.xlu0 %869
        %872 = vset.pattern.permute.xlu0 3
        %873 = vperm.xlu0 %872, %v695
        %v874 = vpop.permute.xlu0 %873
        %876 = vset.pattern.permute.xlu0 3
        %877 = vperm.xlu0 %876, %v696
        %v878 = vpop.permute.xlu0 %877
        %880 = vset.pattern.permute.xlu0 3
        %881 = vperm.xlu0 %880, %v697
        %v882 = vpop.permute.xlu0 %881
        %884 = vset.pattern.permute.xlu0 3
        %885 = vperm.xlu0 %884, %v698
        %v886 = vpop.permute.xlu0 %885
        %v888 = vlaneseq
        %v889 = vshrl.u32 %v888, 7
        %v890 = vsub.s32 3, %v889
        %v891 = vrot.slane %v699, %v890
        %v892 = vmul.f32 %v858, %v891
        %v893 = vmul.f32 %v862, %v891
        %v894 = vmul.f32 %v866, %v891
        %v895 = vmul.f32 %v870, %v891
        %v896 = vmul.f32 %v874, %v891
        %v897 = vmul.f32 %v878, %v891
        %v898 = vmul.f32 %v882, %v891
        %v899 = vmul.f32 %v886, %v891
        %v900 = vadd.f32 %v848, %v892
        %v901 = vadd.f32 %v849, %v893
        %v902 = vadd.f32 %v850, %v894
        %v903 = vadd.f32 %v851, %v895
        %v904 = vadd.f32 %v852, %v896
        %v905 = vadd.f32 %v853, %v897
        %v906 = vadd.f32 %v854, %v898
        %v907 = vadd.f32 %v855, %v899
        %v908 = vld [vmem:[%s570] sm:$0x1]
        %v910 = vlaneseq
        %v911 = vshrl.u32 %v910, 7
        %v912 = vsub.s32 0, %v911
        %v913 = vrot.slane %v908, %v912
        %v915 = vadd.f32 %v900, %v913
        %v916 = vadd.f32 %v901, %v913
        %v917 = vadd.f32 %v902, %v913
        %v918 = vadd.f32 %v903, %v913
        %v919 = vadd.f32 %v904, %v913
        %v920 = vadd.f32 %v905, %v913
        %v921 = vadd.f32 %v906, %v913
        %v922 = vadd.f32 %v907, %v913
        %v923 = vld [vmem:[%s2] sm:$0xf]
        %v924 = vld [vmem:[%s2 + $0x4] sm:$0xf]
        %v925 = vld [vmem:[%s2 + $0x8] sm:$0xf]
        %v926 = vld [vmem:[%s2 + $0xc] sm:$0xf]
        %v927 = vld [vmem:[%s2 + $0x10] sm:$0xf]
        %v928 = vld [vmem:[%s2 + $0x14] sm:$0xf]
        %v929 = vld [vmem:[%s2 + $0x18] sm:$0xf]
        %v930 = vld [vmem:[%s2 + $0x1c] sm:$0xf]
        %v931 = vpack.c.bf16 %v688, %v687
        %v932 = vpack.c.bf16 %v690, %v689
        %v941 = vunpack.c.l.b16 %v923
        %v942 = vunpack.c.l.b16 %v924
        %v943 = vunpack.c.l.b16 %v925
        %v944 = vunpack.c.l.b16 %v926
        %v945 = vunpack.c.l.b16 %v927
        %v946 = vunpack.c.l.b16 %v928
        %v947 = vunpack.c.l.b16 %v929
        %v948 = vunpack.c.l.b16 %v930
        %v949 = vpack.c.b16 %v942, %v941
        %v950 = vpack.c.b16 %v944, %v943
        %v951 = vpack.c.b16 %v946, %v945
        %v952 = vpack.c.b16 %v948, %v947
        %vm953 = vcmask 261120
        %v955 = vsel %vm953, %v949, 0
        %v958 = vsel %vm953, %v950, 0
        %v961 = vsel %vm953, %v951, 0
        %v964 = vsel %vm953, %v952, 0
        %966 = vmatprep.subr.bf16.mxu0 0
        %967 = vmatpush1.bf16.msra.mxu0 %v931
        %968 = vmatprep.subr.bf16.mxu0 0
        %969 = vmatpush1.bf16.msra.mxu0 %v932
        %970 = vmatprep.subr.bf16.mxu0 0
        %971 = vmatpush1.bf16.msra.mxu0 0
        %972 = vmatprep.subr.bf16.mxu0 0
        %973 = vmatpush1.bf16.msra.mxu0 0
        %974 = vmatprep.subr.bf16.mxu0 0
        %975 = vmatpush1.bf16.msra.mxu0 0
        %976 = vmatprep.subr.bf16.mxu0 0
        %977 = vmatpush1.bf16.msra.mxu0 0
        %978 = vmatprep.subr.bf16.mxu0 0
        %979 = vmatpush1.bf16.msra.mxu0 0
        %980 = vmatprep.subr.bf16.mxu0 0
        %981 = vmatpush1.bf16.msra.mxu0 0
        %982 = vmatprep.subr.bf16.mxu0 0
        %983 = vmatpush1.bf16.msra.mxu0 0
        %984 = vmatprep.subr.bf16.mxu0 0
        %985 = vmatpush1.bf16.msra.mxu0 0
        %986 = vmatprep.subr.bf16.mxu0 0
        %987 = vmatpush1.bf16.msra.mxu0 0
        %988 = vmatprep.subr.bf16.mxu0 0
        %989 = vmatpush1.bf16.msra.mxu0 0
        %990 = vmatprep.subr.bf16.mxu0 0
        %991 = vmatpush1.bf16.msra.mxu0 0
        %992 = vmatprep.subr.bf16.mxu0 0
        %993 = vmatpush1.bf16.msra.mxu0 0
        %994 = vmatprep.subr.bf16.mxu0 0
        %995 = vmatpush1.bf16.msra.mxu0 0
        %996 = vmatprep.subr.bf16.mxu0 0
        %997 = vmatpush1.bf16.msra.mxu0 0
        %998 = vmatprep.mubr.bf16.mxu0 0
        %999 = vmatmul.mubr.bf16.gmra.mrb[0].mxu0 %v955
        %v1000 = vpop.f32.mrb[0].mxu0
        %v1001 = vadd.f32 %v915, %v1000
        %v1002 = vpop.f32.mrb[0].mxu0
        %v1003 = vpop.f32.mrb[0].mxu0
        %v1004 = vadd.f32 %v916, %v1003
        %v1005 = vpop.f32.mrb[0].mxu0
        %1006 = vmatprep.mubr.bf16.mxu0 0
        %1007 = vmatmul.mubr.bf16.gmra.mrb[0].mxu0 %v958
        %v1008 = vpop.f32.mrb[0].mxu0
        %v1009 = vadd.f32 %v917, %v1008
        %v1010 = vpop.f32.mrb[0].mxu0
        %v1011 = vpop.f32.mrb[0].mxu0
        %v1012 = vadd.f32 %v918, %v1011
        %v1013 = vpop.f32.mrb[0].mxu0
        %1014 = vmatprep.mubr.bf16.mxu0 0
        %1015 = vmatmul.mubr.bf16.gmra.mrb[0].mxu0 %v961
        %v1016 = vpop.f32.mrb[0].mxu0
        %v1017 = vadd.f32 %v919, %v1016
        %v1018 = vpop.f32.mrb[0].mxu0
        %v1019 = vpop.f32.mrb[0].mxu0
        %v1020 = vadd.f32 %v920, %v1019
        %v1021 = vpop.f32.mrb[0].mxu0
        %1022 = vmatprep.mubr.bf16.mxu0 0
        %1023 = vmatmul.mubr.bf16.gmra.mrb[0].mxu0 %v964
        %v1024 = vpop.f32.mrb[0].mxu0
        %v1025 = vadd.f32 %v921, %v1024
        %v1026 = vpop.f32.mrb[0].mxu0
        %v1027 = vpop.f32.mrb[0].mxu0
        %v1028 = vadd.f32 %v922, %v1027
        %v1029 = vpop.f32.mrb[0].mxu0
        %1030 = vdwg.mxu0
        %v1031 = vmax.f32 %v1001, 0.0
        %v1032 = vmax.f32 %v1004, 0.0
        %v1033 = vmax.f32 %v1009, 0.0
        %v1034 = vmax.f32 %v1012, 0.0
        %v1035 = vmax.f32 %v1017, 0.0
        %v1036 = vmax.f32 %v1020, 0.0
        %v1037 = vmax.f32 %v1025, 0.0
        %v1038 = vmax.f32 %v1028, 0.0
        %v1039 = vld [vmem:[%s3] sm:$0xf]
        %v1040 = vld [vmem:[%s3 + $0x4] sm:$0xf]
        %v1041 = vld [vmem:[%s3 + $0x8] sm:$0xf]
        %v1042 = vld [vmem:[%s3 + $0xc] sm:$0xf]
        %v1043 = vpack.c.bf16 %v1032, %v1031
        %v1044 = vpack.c.bf16 %v1034, %v1033
        %v1045 = vpack.c.bf16 %v1036, %v1035
        %v1046 = vpack.c.bf16 %v1038, %v1037
        %v1051 = vunpack.c.l.b16 %v1039
        %v1052 = vunpack.c.l.b16 %v1040
        %v1053 = vunpack.c.l.b16 %v1041
        %v1054 = vunpack.c.l.b16 %v1042
        %v1055 = vpack.c.b16 %v1052, %v1051
        %v1056 = vpack.c.b16 %v1054, %v1053
        %vm1057 = vcmask 523264
        %v1059 = vsel %vm1057, %v1055, 0
        %v1062 = vsel %vm1057, %v1056, 0
        %1064 = vmatprep.subr.bf16.mxu0 0
        %1065 = vmatpush1.bf16.msra.mxu0 %v1043
        %1066 = vmatprep.subr.bf16.mxu0 0
        %1067 = vmatpush1.bf16.msra.mxu0 %v1044
        %1068 = vmatprep.subr.bf16.mxu0 0
        %1069 = vmatpush1.bf16.msra.mxu0 %v1045
        %1070 = vmatprep.subr.bf16.mxu0 0
        %1071 = vmatpush1.bf16.msra.mxu0 %v1046
        %1072 = vmatprep.subr.bf16.mxu0 0
        %1073 = vmatpush1.bf16.msra.mxu0 0
        %1074 = vmatprep.subr.bf16.mxu0 0
        %1075 = vmatpush1.bf16.msra.mxu0 0
        %1076 = vmatprep.subr.bf16.mxu0 0
        %1077 = vmatpush1.bf16.msra.mxu0 0
        %1078 = vmatprep.subr.bf16.mxu0 0
        %1079 = vmatpush1.bf16.msra.mxu0 0
        %1080 = vmatprep.subr.bf16.mxu0 0
        %1081 = vmatpush1.bf16.msra.mxu0 0
        %1082 = vmatprep.subr.bf16.mxu0 0
        %1083 = vmatpush1.bf16.msra.mxu0 0
        %1084 = vmatprep.subr.bf16.mxu0 0
        %1085 = vmatpush1.bf16.msra.mxu0 0
        %1086 = vmatprep.subr.bf16.mxu0 0
        %1087 = vmatpush1.bf16.msra.mxu0 0
        %1088 = vmatprep.subr.bf16.mxu0 0
        %1089 = vmatpush1.bf16.msra.mxu0 0
        %1090 = vmatprep.subr.bf16.mxu0 0
        %1091 = vmatpush1.bf16.msra.mxu0 0
        %1092 = vmatprep.subr.bf16.mxu0 0
        %1093 = vmatpush1.bf16.msra.mxu0 0
        %1094 = vmatprep.subr.bf16.mxu0 0
        %1095 = vmatpush1.bf16.msra.mxu0 0
        %1096 = vmatprep.mubr.bf16.mxu0 0
        %1097 = vmatmul.mubr.bf16.gmra.mrb[0].mxu0 %v1059
        %v1098 = vpop.f32.mrb[0].mxu0
        %v1099 = vadd.f32 0.0, %v1098
        %v1100 = vpop.f32.mrb[0].mxu0
        %v1101 = vpop.f32.mrb[0].mxu0
        %v1102 = vadd.f32 0.0, %v1101
        %v1103 = vpop.f32.mrb[0].mxu0
        %1104 = vmatprep.mubr.bf16.mxu0 0
        %1105 = vmatmul.mubr.bf16.gmra.mrb[0].mxu0 %v1062
        %v1106 = vpop.f32.mrb[0].mxu0
        %v1107 = vadd.f32 0.0, %v1106
        %v1108 = vpop.f32.mrb[0].mxu0
        %v1109 = vpop.f32.mrb[0].mxu0
        %v1110 = vadd.f32 0.0, %v1109
        %v1111 = vpop.f32.mrb[0].mxu0
        %1112 = vdwg.mxu0
        %v1113 = vadd.f32 %v687, %v1099
        %v1114 = vadd.f32 %v688, %v1102
        %v1115 = vadd.f32 %v689, %v1107
        %v1116 = vadd.f32 %v690, %v1110
        %v1117 = vpack.c.bf16 %v1114, %v1113
        %v1118 = vpack.c.bf16 %v1116, %v1115
        %v1119 = vld [vmem:[%s496] sm:$0xff]
        %v1120 = vld [vmem:[%s496 + $0x8] sm:$0xff]
        %v1121 = vld [vmem:[%s496 + $0x10] sm:$0xff]
        %v1122 = vld [vmem:[%s496 + $0x18] sm:$0xff]
        %v1123 = vld [vmem:[%s496 + $0x20] sm:$0xff]
        %v1124 = vld [vmem:[%s496 + $0x28] sm:$0xff]
        %v1125 = vld [vmem:[%s496 + $0x30] sm:$0xff]
        %v1126 = vld [vmem:[%s496 + $0x38] sm:$0xff]
        %v1127 = vld [vmem:[%s496 + $0x40] sm:$0xff]
        %v1128 = vld [vmem:[%s496 + $0x48] sm:$0xff]
        %v1129 = vld [vmem:[%s496 + $0x50] sm:$0xff]
        %v1130 = vld [vmem:[%s496 + $0x58] sm:$0xff]
        %v1131 = vld [vmem:[%s496 + $0x60] sm:$0xff]
        %v1132 = vld [vmem:[%s496 + $0x68] sm:$0xff]
        %v1133 = vld [vmem:[%s496 + $0x70] sm:$0xff]
        %v1134 = vld [vmem:[%s496 + $0x78] sm:$0xff]
        %v1135 = vld [vmem:[%s574] sm:$0x3]
        %v1137 = vlaneseq
        %v1138 = vshrl.u32 %v1137, 7
        %v1139 = vsub.s32 0, %v1138
        %v1140 = vrot.slane %v1135, %v1139
        %v1141 = vlaneseq
        %v1142 = vshrl.u32 %v1141, 7
        %v1143 = vsub.s32 1, %v1142
        %v1144 = vrot.slane %v1135, %v1143
        %v1163 = vunpack.c.l.b16 %v1119
        %v1164 = vunpack.c.h.b16 %v1119
        %v1165 = vunpack.c.l.b16 %v1120
        %v1166 = vunpack.c.h.b16 %v1120
        %v1167 = vunpack.c.l.b16 %v1121
        %v1168 = vunpack.c.h.b16 %v1121
        %v1169 = vunpack.c.l.b16 %v1122
        %v1170 = vunpack.c.h.b16 %v1122
        %v1171 = vunpack.c.l.b16 %v1123
        %v1172 = vunpack.c.h.b16 %v1123
        %v1173 = vunpack.c.l.b16 %v1124
        %v1174 = vunpack.c.h.b16 %v1124
        %v1175 = vunpack.c.l.b16 %v1125
        %v1176 = vunpack.c.h.b16 %v1125
        %v1177 = vunpack.c.l.b16 %v1126
        %v1178 = vunpack.c.h.b16 %v1126
        %v1179 = vunpack.c.l.b16 %v1127
        %v1180 = vunpack.c.h.b16 %v1127
        %v1181 = vunpack.c.l.b16 %v1128
        %v1182 = vunpack.c.h.b16 %v1128
        %v1183 = vunpack.c.l.b16 %v1129
        %v1184 = vunpack.c.h.b16 %v1129
        %v1185 = vunpack.c.l.b16 %v1130
        %v1186 = vunpack.c.h.b16 %v1130
        %v1187 = vunpack.c.l.b16 %v1131
        %v1188 = vunpack.c.h.b16 %v1131
        %v1189 = vunpack.c.l.b16 %v1132
        %v1190 = vunpack.c.h.b16 %v1132
        %v1191 = vunpack.c.l.b16 %v1133
        %v1192 = vunpack.c.h.b16 %v1133
        %v1193 = vunpack.c.l.b16 %v1134
        %v1194 = vunpack.c.h.b16 %v1134
        %v1195 = vpack.c.b16 %v1165, %v1163
        %v1196 = vpack.c.b16 %v1166, %v1164
        %v1197 = vpack.c.b16 %v1169, %v1167
        %v1198 = vpack.c.b16 %v1170, %v1168
        %v1199 = vpack.c.b16 %v1173, %v1171
        %v1200 = vpack.c.b16 %v1174, %v1172
        %v1201 = vpack.c.b16 %v1177, %v1175
        %v1202 = vpack.c.b16 %v1178, %v1176
        %v1203 = vpack.c.b16 %v1181, %v1179
        %v1204 = vpack.c.b16 %v1182, %v1180
        %v1205 = vpack.c.b16 %v1185, %v1183
        %v1206 = vpack.c.b16 %v1186, %v1184
        %v1207 = vpack.c.b16 %v1189, %v1187
        %v1208 = vpack.c.b16 %v1190, %v1188
        %v1209 = vpack.c.b16 %v1193, %v1191
        %v1210 = vpack.c.b16 %v1194, %v1192
        %1227 = vmatprep.subr.bf16.mxu0 %v1196
        %1228 = vmatpush1.bf16.msra.mxu0 %v1195
        %1229 = vmatprep.subr.bf16.mxu0 %v1198
        %1230 = vmatpush1.bf16.msra.mxu0 %v1197
        %1231 = vmatprep.subr.bf16.mxu0 %v1200
        %1232 = vmatpush1.bf16.msra.mxu0 %v1199
        %1233 = vmatprep.subr.bf16.mxu0 %v1202
        %1234 = vmatpush1.bf16.msra.mxu0 %v1201
        %1235 = vmatprep.subr.bf16.mxu0 %v1204
        %1236 = vmatpush1.bf16.msra.mxu0 %v1203
        %1237 = vmatprep.subr.bf16.mxu0 %v1206
        %1238 = vmatpush1.bf16.msra.mxu0 %v1205
        %1239 = vmatprep.subr.bf16.mxu0 %v1208
        %1240 = vmatpush1.bf16.msra.mxu0 %v1207
        %1241 = vmatprep.subr.bf16.mxu0 %v1210
        %1242 = vmatpush1.bf16.msra.mxu0 %v1209
        %1243 = vmatprep.subr.bf16.mxu0 0
        %1244 = vmatpush1.bf16.msra.mxu0 0
        %1245 = vmatprep.subr.bf16.mxu0 0
        %1246 = vmatpush1.bf16.msra.mxu0 0
        %1247 = vmatprep.subr.bf16.mxu0 0
        %1248 = vmatpush1.bf16.msra.mxu0 0
        %1249 = vmatprep.subr.bf16.mxu0 0
        %1250 = vmatpush1.bf16.msra.mxu0 0
        %1251 = vmatprep.subr.bf16.mxu0 0
        %1252 = vmatpush1.bf16.msra.mxu0 0
        %1253 = vmatprep.subr.bf16.mxu0 0
        %1254 = vmatpush1.bf16.msra.mxu0 0
        %1255 = vmatprep.subr.bf16.mxu0 0
        %1256 = vmatpush1.bf16.msra.mxu0 0
        %1257 = vmatprep.subr.bf16.mxu0 0
        %1258 = vmatpush1.bf16.msra.mxu0 0
        %1259 = vmatprep.mubr.bf16.mxu0 0
        %1260 = vmatmul.mubr.bf16.gmra.mrb[0].mxu0 %v1117
        %v1261 = vpop.f32.mrb[0].mxu0
        %v1262 = vadd.f32 %v1140, %v1261
        %v1263 = vpop.f32.mrb[0].mxu0
        %v1264 = vadd.f32 %v1144, %v1263
        %v1265 = vpop.f32.mrb[0].mxu0
        %v1266 = vadd.f32 %v1140, %v1265
        %v1267 = vpop.f32.mrb[0].mxu0
        %v1268 = vadd.f32 %v1144, %v1267
        %1269 = vmatprep.mubr.bf16.mxu0 0
        %1270 = vmatmul.mubr.bf16.gmra.mrb[0].mxu0 %v1118
        %v1271 = vpop.f32.mrb[0].mxu0
        %v1272 = vadd.f32 %v1140, %v1271
        %v1273 = vpop.f32.mrb[0].mxu0
        %v1274 = vadd.f32 %v1144, %v1273
        %v1275 = vpop.f32.mrb[0].mxu0
        %v1276 = vadd.f32 %v1140, %v1275
        %v1277 = vpop.f32.mrb[0].mxu0
        %v1278 = vadd.f32 %v1144, %v1277
        %1279 = vdwg.mxu0
        %v1280 = vmax.f32 %v1262, 0.0
        %v1281 = vmax.f32 %v1264, 0.0
        %v1282 = vmax.f32 %v1266, 0.0
        %v1283 = vmax.f32 %v1268, 0.0
        %v1284 = vmax.f32 %v1272, 0.0
        %v1285 = vmax.f32 %v1274, 0.0
        %v1286 = vmax.f32 %v1276, 0.0
        %v1287 = vmax.f32 %v1278, 0.0
        %v1288 = vpack.c.bf16 %v1282, %v1280
        %v1289 = vpack.c.bf16 %v1283, %v1281
        %v1290 = vpack.c.bf16 %v1286, %v1284
        %v1291 = vpack.c.bf16 %v1287, %v1285
        %v1292 = vld [vmem:[%s505] sm:$0xf]
        %v1293 = vld [vmem:[%s505 + $0x4] sm:$0xf]
        %v1294 = vld [vmem:[%s505 + $0x8] sm:$0xf]
        %v1295 = vld [vmem:[%s505 + $0xc] sm:$0xf]
        %v1296 = vld [vmem:[%s505 + $0x10] sm:$0xf]
        %v1297 = vld [vmem:[%s505 + $0x14] sm:$0xf]
        %v1298 = vld [vmem:[%s505 + $0x18] sm:$0xf]
        %v1299 = vld [vmem:[%s505 + $0x1c] sm:$0xf]
        %v1300 = vld [vmem:[%s505 + $0x20] sm:$0xf]
        %v1301 = vld [vmem:[%s505 + $0x24] sm:$0xf]
        %v1302 = vld [vmem:[%s505 + $0x28] sm:$0xf]
        %v1303 = vld [vmem:[%s505 + $0x2c] sm:$0xf]
        %v1304 = vld [vmem:[%s505 + $0x30] sm:$0xf]
        %v1305 = vld [vmem:[%s505 + $0x34] sm:$0xf]
        %v1306 = vld [vmem:[%s505 + $0x38] sm:$0xf]
        %v1307 = vld [vmem:[%s505 + $0x3c] sm:$0xf]
        %v1308 = vld [vmem:[%s505 + $0x40] sm:$0xf]
        %v1309 = vld [vmem:[%s505 + $0x44] sm:$0xf]
        %v1310 = vld [vmem:[%s505 + $0x48] sm:$0xf]
        %v1311 = vld [vmem:[%s505 + $0x4c] sm:$0xf]
        %v1312 = vld [vmem:[%s505 + $0x50] sm:$0xf]
        %v1313 = vld [vmem:[%s505 + $0x54] sm:$0xf]
        %v1314 = vld [vmem:[%s505 + $0x58] sm:$0xf]
        %v1315 = vld [vmem:[%s505 + $0x5c] sm:$0xf]
        %v1316 = vld [vmem:[%s505 + $0x60] sm:$0xf]
        %v1317 = vld [vmem:[%s505 + $0x64] sm:$0xf]
        %v1318 = vld [vmem:[%s505 + $0x68] sm:$0xf]
        %v1319 = vld [vmem:[%s505 + $0x6c] sm:$0xf]
        %v1320 = vld [vmem:[%s505 + $0x70] sm:$0xf]
        %v1321 = vld [vmem:[%s505 + $0x74] sm:$0xf]
        %v1322 = vld [vmem:[%s505 + $0x78] sm:$0xf]
        %v1323 = vld [vmem:[%s505 + $0x7c] sm:$0xf]
        %v1324 = vld [vmem:[%s577] sm:$0x1]
        %v1326 = vlaneseq
        %v1327 = vshrl.u32 %v1326, 7
        %v1328 = vsub.s32 0, %v1327
        %v1329 = vrot.slane %v1324, %v1328
        %v1363 = vunpack.c.l.b16 %v1292
        %v1364 = vunpack.c.l.b16 %v1293
        %v1365 = vunpack.c.l.b16 %v1294
        %v1366 = vunpack.c.l.b16 %v1295
        %v1367 = vunpack.c.l.b16 %v1296
        %v1368 = vunpack.c.l.b16 %v1297
        %v1369 = vunpack.c.l.b16 %v1298
        %v1370 = vunpack.c.l.b16 %v1299
        %v1371 = vunpack.c.l.b16 %v1300
        %v1372 = vunpack.c.l.b16 %v1301
        %v1373 = vunpack.c.l.b16 %v1302
        %v1374 = vunpack.c.l.b16 %v1303
        %v1375 = vunpack.c.l.b16 %v1304
        %v1376 = vunpack.c.l.b16 %v1305
        %v1377 = vunpack.c.l.b16 %v1306
        %v1378 = vunpack.c.l.b16 %v1307
        %v1379 = vunpack.c.l.b16 %v1308
        %v1380 = vunpack.c.l.b16 %v1309
        %v1381 = vunpack.c.l.b16 %v1310
        %v1382 = vunpack.c.l.b16 %v1311
        %v1383 = vunpack.c.l.b16 %v1312
        %v1384 = vunpack.c.l.b16 %v1313
        %v1385 = vunpack.c.l.b16 %v1314
        %v1386 = vunpack.c.l.b16 %v1315
        %v1387 = vunpack.c.l.b16 %v1316
        %v1388 = vunpack.c.l.b16 %v1317
        %v1389 = vunpack.c.l.b16 %v1318
        %v1390 = vunpack.c.l.b16 %v1319
        %v1391 = vunpack.c.l.b16 %v1320
        %v1392 = vunpack.c.l.b16 %v1321
        %v1393 = vunpack.c.l.b16 %v1322
        %v1394 = vunpack.c.l.b16 %v1323
        %v1395 = vpack.c.b16 %v1364, %v1363
        %v1396 = vpack.c.b16 %v1366, %v1365
        %v1397 = vpack.c.b16 %v1368, %v1367
        %v1398 = vpack.c.b16 %v1370, %v1369
        %v1399 = vpack.c.b16 %v1372, %v1371
        %v1400 = vpack.c.b16 %v1374, %v1373
        %v1401 = vpack.c.b16 %v1376, %v1375
        %v1402 = vpack.c.b16 %v1378, %v1377
        %v1403 = vpack.c.b16 %v1380, %v1379
        %v1404 = vpack.c.b16 %v1382, %v1381
        %v1405 = vpack.c.b16 %v1384, %v1383
        %v1406 = vpack.c.b16 %v1386, %v1385
        %v1407 = vpack.c.b16 %v1388, %v1387
        %v1408 = vpack.c.b16 %v1390, %v1389
        %v1409 = vpack.c.b16 %v1392, %v1391
        %v1410 = vpack.c.b16 %v1394, %v1393
        %1427 = vmatprep.subr.bf16.mxu0 0
        %1428 = vmatpush1.bf16.msra.mxu0 %v1395
        %1429 = vmatprep.subr.bf16.mxu0 0
        %1430 = vmatpush1.bf16.msra.mxu0 %v1396
        %1431 = vmatprep.subr.bf16.mxu0 0
        %1432 = vmatpush1.bf16.msra.mxu0 %v1397
        %1433 = vmatprep.subr.bf16.mxu0 0
        %1434 = vmatpush1.bf16.msra.mxu0 %v1398
        %1435 = vmatprep.subr.bf16.mxu0 0
        %1436 = vmatpush1.bf16.msra.mxu0 %v1399
        %1437 = vmatprep.subr.bf16.mxu0 0
        %1438 = vmatpush1.bf16.msra.mxu0 %v1400
        %1439 = vmatprep.subr.bf16.mxu0 0
        %1440 = vmatpush1.bf16.msra.mxu0 %v1401
        %1441 = vmatprep.subr.bf16.mxu0 0
        %1442 = vmatpush1.bf16.msra.mxu0 %v1402
        %1443 = vmatprep.subr.bf16.mxu0 0
        %1444 = vmatpush1.bf16.msra.mxu0 %v1403
        %1445 = vmatprep.subr.bf16.mxu0 0
        %1446 = vmatpush1.bf16.msra.mxu0 %v1404
        %1447 = vmatprep.subr.bf16.mxu0 0
        %1448 = vmatpush1.bf16.msra.mxu0 %v1405
        %1449 = vmatprep.subr.bf16.mxu0 0
        %1450 = vmatpush1.bf16.msra.mxu0 %v1406
        %1451 = vmatprep.subr.bf16.mxu0 0
        %1452 = vmatpush1.bf16.msra.mxu0 %v1407
        %1453 = vmatprep.subr.bf16.mxu0 0
        %1454 = vmatpush1.bf16.msra.mxu0 %v1408
        %1455 = vmatprep.subr.bf16.mxu0 0
        %1456 = vmatpush1.bf16.msra.mxu0 %v1409
        %1457 = vmatprep.subr.bf16.mxu0 0
        %1458 = vmatpush1.bf16.msra.mxu0 %v1410
        %1459 = vmatprep.mubr.bf16.mxu0 %v1289
        %1460 = vmatmul.mubr.bf16.gmra.mrb[0].mxu0 %v1288
        %v1461 = vpop.f32.mrb[0].mxu0
        %v1462 = vadd.f32 %v1329, %v1461
        %v1463 = vpop.f32.mrb[0].mxu0
        %v1464 = vpop.f32.mrb[0].mxu0
        %v1465 = vadd.f32 %v1329, %v1464
        %v1466 = vpop.f32.mrb[0].mxu0
        %1467 = vmatprep.mubr.bf16.mxu0 %v1291
        %1468 = vmatmul.mubr.bf16.gmra.mrb[0].mxu0 %v1290
        %v1469 = vpop.f32.mrb[0].mxu0
        %v1470 = vadd.f32 %v1329, %v1469
        %v1471 = vpop.f32.mrb[0].mxu0
        %v1472 = vpop.f32.mrb[0].mxu0
        %v1473 = vadd.f32 %v1329, %v1472
        %v1474 = vpop.f32.mrb[0].mxu0
        %1475 = vdwg.mxu0
        %p1476 = scmp.ne.s32.totalorder %s34, 4
        // Predicated region
        $region89: #{tpu_custom_call.1} parent=75 // pred_check
          %p1477 = pneg %p1476
        $region90: #{tpu_custom_call.1} parent=75 // pred_check_branch
          %1479 = sbr.rel (%p1477) target = $region92
        $region91: #{tpu_custom_call.1} parent=75 // pred_region
          %v1480 = vmax.f32 %v1462, 0.0
          %v1481 = vmax.f32 %v1465, 0.0
          %v1482 = vmax.f32 %v1470, 0.0
          %v1483 = vmax.f32 %v1473, 0.0
          %1484 = vst [vmem:[#allocation2] sm:$0xff] %v1480
          %1485 = vst [vmem:[#allocation2 + $0x8] sm:$0xff] %v1481
          %1486 = vst [vmem:[#allocation2 + $0x10] sm:$0xff] %v1482
          %1487 = vst [vmem:[#allocation2 + $0x18] sm:$0xff] %v1483
        $region92: #{tpu_custom_call.1} parent=75 // pred_fallthru
          _
        %p1488 = scmp.eq.s32.totalorder %s34, 4
        // Predicated region
        $region93: #{tpu_custom_call.1} parent=75 // pred_check
          %p1489 = pneg %p1488
        $region94: #{tpu_custom_call.1} parent=75 // pred_check_branch
          %1491 = sbr.rel (%p1489) target = $region96
        $region95: #{tpu_custom_call.1} parent=75 // pred_region
          $region97: #{tpu_custom_call.1} parent=95
            #allocation8 [shape = 'u8[512]{0}', space=vmem, size = 0x400, scoped, tag = 'scoped memory for tpu_custom_call.1']
            #allocation9 [shape = 's32[1]{0}', space=sflag, size = 0x4, scoped, tag = 'scoped memory for tpu_custom_call.1']
            %p1493 = scmp.lt.u32.totalorder 1, 8
            %p1494 = pneg %p1493
            // Predicated region
            $region98: #{tpu_custom_call.1} parent=97 // pred_check
              _
            $region99: #{tpu_custom_call.1} parent=97 // pred_check_branch
              %1496 = sbr.rel (%p1493) target = $region101
            $region100: #{tpu_custom_call.1} parent=97 // pred_region
              %s1511 = sand.u32 1, 7
              %p1512 = scmp.eq.s32.totalorder %s1511, 0
              %p1513 = pneg %p1512
              // Predicated region
              $region113: #{tpu_custom_call.1} parent=100 // pred_check
                _
              $region114: #{tpu_custom_call.1} parent=100 // pred_check_branch
                %1515 = sbr.rel (%p1512) target = $region116
              $region115: #{tpu_custom_call.1} parent=100 // pred_region
                %s1516 = sand.u32 1, 7
                %s1517 = ssub.s32 1, %s1516
                %s1518 = scalar_lea.vmem %s4, %s1517
                %s1519 = ssub.s32 1, %s1516
                %s1520 = scalar_lea.vmem [#allocation8], %s1519
                %s1521 = sshllo.u32 0, %s1516
                loop: start=0, step=1, limit=1
                $region117: #{tpu_custom_call.1} parent=115 // loop_pre_header
                  _
                $region118: #{tpu_custom_call.1} parent=115 // loop_header
                  %s1523 = sphi 0, %s1527
                  %p1524 = scmp.ge.s32.totalorder %s1523, 1
                  %s1528 = sphi %s1518, %s1518
                  %s1529 = sphi %s1520, %s1520
                $region119: #{tpu_custom_call.1} parent=115 // loop_header_branch
                  %1526 = sbr.rel (%p1524) target = $region123
                $region120: #{tpu_custom_call.1} parent=115 // loop_body
                  %v1530 = vld [vmem:[%s1528] sm:%s1521]
                  %1531 = vst [vmem:[%s1529] sm:%s1521] %v1530
                $region121: #{tpu_custom_call.1} parent=115 // loop_footer
                  %s1527 = sadd.s32 1, %s1523
                $region122: #{tpu_custom_call.1} parent=115 // loop_footer_branch
                  %1522 = sbr.rel target = $region118
                $region123: #{tpu_custom_call.1} parent=115 // loop_exit
                  _
              $region116: #{tpu_custom_call.1} parent=100 // pred_fallthru
                _
            $region101: #{tpu_custom_call.1} parent=97 // pred_fallthru
              _
            // Predicated region
            $region102: #{tpu_custom_call.1} parent=97 // pred_check
              %p1497 = pneg %p1493
            $region103: #{tpu_custom_call.1} parent=97 // pred_check_branch
              %1499 = sbr.rel (%p1497) target = $region105
            $region104: #{tpu_custom_call.1} parent=97 // pred_region
              %s1500 = sshllo.u32 0, 1
              loop: start=0, step=1, limit=1
              $region106: #{tpu_custom_call.1} parent=104 // loop_pre_header
                _
              $region107: #{tpu_custom_call.1} parent=104 // loop_header
                %s1502 = sphi 0, %s1506
                %p1503 = scmp.ge.s32.totalorder %s1502, 1
                %s1507 = sphi %s4, %s4
                %s1508 = sphi [#allocation8], [#allocation8]
              $region108: #{tpu_custom_call.1} parent=104 // loop_header_branch
                %1505 = sbr.rel (%p1503) target = $region112
              $region109: #{tpu_custom_call.1} parent=104 // loop_body
                %v1509 = vld [vmem:[%s1507] sm:%s1500]
                %1510 = vst [vmem:[%s1508] sm:%s1500] %v1509
              $region110: #{tpu_custom_call.1} parent=104 // loop_footer
                %s1506 = sadd.s32 1, %s1502
              $region111: #{tpu_custom_call.1} parent=104 // loop_footer_branch
                %1501 = sbr.rel target = $region107
              $region112: #{tpu_custom_call.1} parent=104 // loop_exit
                _
            $region105: #{tpu_custom_call.1} parent=97 // pred_fallthru
              _
            // Predicated region
            $region124: #{tpu_custom_call.1} parent=97 // pred_check
              _
            $region125: #{tpu_custom_call.1} parent=97 // pred_check_branch
              %1534 = sbr.rel (0) target = $region127
            $region126: #{tpu_custom_call.1} parent=97 // pred_region
              %1535 = vsyncadd [#allocation9], 16
            $region127: #{tpu_custom_call.1} parent=97 // pred_fallthru
              _
            %s1536 = smul.u32 1, 1
            %s1537 = sshll.u32 %s1536, 4
            %1538 = dma.done [#allocation9], %s1537
            %v1539 = vld [vmem:[#allocation8] sm:$0x1]
            %v1540 = vpack.c.bf16 %v1465, %v1462
            %v1541 = vpack.c.bf16 %v1473, %v1470
            %v1543 = vsel %vm953, %v1539, 0
            %1545 = vmatprep.subr.bf16.mxu0 0
            %1546 = vmatpush1.bf16.msra.mxu0 %v1540
            %1547 = vmatprep.subr.bf16.mxu0 0
            %1548 = vmatpush1.bf16.msra.mxu0 %v1541
            %1549 = vmatprep.subr.bf16.mxu0 0
            %1550 = vmatpush1.bf16.msra.mxu0 0
            %1551 = vmatprep.subr.bf16.mxu0 0
            %1552 = vmatpush1.bf16.msra.mxu0 0
            %1553 = vmatprep.subr.bf16.mxu0 0
            %1554 = vmatpush1.bf16.msra.mxu0 0
            %1555 = vmatprep.subr.bf16.mxu0 0
            %1556 = vmatpush1.bf16.msra.mxu0 0
            %1557 = vmatprep.subr.bf16.mxu0 0
            %1558 = vmatpush1.bf16.msra.mxu0 0
            %1559 = vmatprep.subr.bf16.mxu0 0
            %1560 = vmatpush1.bf16.msra.mxu0 0
            %1561 = vmatprep.subr.bf16.mxu0 0
            %1562 = vmatpush1.bf16.msra.mxu0 0
            %1563 = vmatprep.subr.bf16.mxu0 0
            %1564 = vmatpush1.bf16.msra.mxu0 0
            %1565 = vmatprep.subr.bf16.mxu0 0
            %1566 = vmatpush1.bf16.msra.mxu0 0
            %1567 = vmatprep.subr.bf16.mxu0 0
            %1568 = vmatpush1.bf16.msra.mxu0 0
            %1569 = vmatprep.subr.bf16.mxu0 0
            %1570 = vmatpush1.bf16.msra.mxu0 0
            %1571 = vmatprep.subr.bf16.mxu0 0
            %1572 = vmatpush1.bf16.msra.mxu0 0
            %1573 = vmatprep.subr.bf16.mxu0 0
            %1574 = vmatpush1.bf16.msra.mxu0 0
            %1575 = vmatprep.subr.bf16.mxu0 0
            %1576 = vmatpush1.bf16.msra.mxu0 0
            %1577 = vmatprep.mubr.bf16.mxu0 0
            %1578 = vmatmul.mubr.bf16.gmra.mrb[0].mxu0 %v1543
            %v1579 = vpop.f32.mrb[0].mxu0
            %v1580 = vadd.f32 0.0, %v1579
            %v1581 = vpop.f32.mrb[0].mxu0
            %v1582 = vpop.f32.mrb[0].mxu0
            %v1583 = vpop.f32.mrb[0].mxu0
            %1584 = vdwg.mxu0
            %v1585 = vld [vmem:[%s13] sm:$0xff]
            %v1586 = vld [vmem:[%s13 + $0x8] sm:$0xff]
            %v1587 = vld [vmem:[%s13 + $0x10] sm:$0xff]
            %v1588 = vld [vmem:[%s13 + $0x18] sm:$0xff]
            %v1589 = vld [vmem:[%s13 + $0x20] sm:$0xff]
            %v1590 = vld [vmem:[%s13 + $0x28] sm:$0xff]
            %v1591 = vld [vmem:[%s13 + $0x30] sm:$0xff]
            %v1592 = vld [vmem:[%s13 + $0x38] sm:$0xff]
            %v1593 = vld [vmem:[%s13 + $0x40] sm:$0xff]
            %v1594 = vld [vmem:[%s13 + $0x48] sm:$0xff]
            %v1595 = vld [vmem:[%s13 + $0x50] sm:$0xff]
            %v1596 = vld [vmem:[%s13 + $0x58] sm:$0xff]
            %v1597 = vld [vmem:[%s13 + $0x60] sm:$0xff]
            %v1598 = vld [vmem:[%s13 + $0x68] sm:$0xff]
            %v1599 = vld [vmem:[%s13 + $0x70] sm:$0xff]
            %v1600 = vld [vmem:[%s13 + $0x78] sm:$0xff]
            %v1601 = vld [vmem:[#allocation3] sm:$0x1]
            %v1603 = vlaneseq
            %v1604 = vshrl.u32 %v1603, 7
            %v1605 = vsub.s32 0, %v1604
            %v1606 = vrot.slane %v1601, %v1605
            %1608 = vmatprep.subr.mxu0 0.0
            %1609 = vmatpush1.msra.mxu0 %v1585
            %1610 = vmatprep.subr.mxu0 0.0
            %1611 = vmatpush1.msra.mxu0 %v1586
            %1612 = vmatprep.subr.mxu0 0.0
            %1613 = vmatpush1.msra.mxu0 %v1587
            %1614 = vmatprep.subr.mxu0 0.0
            %1615 = vmatpush1.msra.mxu0 %v1588
            %1616 = vmatprep.subr.mxu0 0.0
            %1617 = vmatpush1.msra.mxu0 %v1589
            %1618 = vmatprep.subr.mxu0 0.0
            %1619 = vmatpush1.msra.mxu0 %v1590
            %1620 = vmatprep.subr.mxu0 0.0
            %1621 = vmatpush1.msra.mxu0 %v1591
            %1622 = vmatprep.subr.mxu0 0.0
            %1623 = vmatpush1.msra.mxu0 %v1592
            %1624 = vmatprep.subr.mxu0 0.0
            %1625 = vmatpush1.msra.mxu0 %v1593
            %1626 = vmatprep.subr.mxu0 0.0
            %1627 = vmatpush1.msra.mxu0 %v1594
            %1628 = vmatprep.subr.mxu0 0.0
            %1629 = vmatpush1.msra.mxu0 %v1595
            %1630 = vmatprep.subr.mxu0 0.0
            %1631 = vmatpush1.msra.mxu0 %v1596
            %1632 = vmatprep.subr.mxu0 0.0
            %1633 = vmatpush1.msra.mxu0 %v1597
            %1634 = vmatprep.subr.mxu0 0.0
            %1635 = vmatpush1.msra.mxu0 %v1598
            %1636 = vmatprep.subr.mxu0 0.0
            %1637 = vmatpush1.msra.mxu0 %v1599
            %1638 = vmatprep.subr.mxu0 0.0
            %1639 = vmatpush1.msra.mxu0 %v1600
            %1640 = vmatprep.subr.mxu0 0.0
            %1641 = vmatpush1.msra.mxu0 0.0
            %1642 = vmatprep.subr.mxu0 0.0
            %1643 = vmatpush1.msra.mxu0 0.0
            %1644 = vmatprep.subr.mxu0 0.0
            %1645 = vmatpush1.msra.mxu0 0.0
            %1646 = vmatprep.subr.mxu0 0.0
            %1647 = vmatpush1.msra.mxu0 0.0
            %1648 = vmatprep.subr.mxu0 0.0
            %1649 = vmatpush1.msra.mxu0 0.0
            %1650 = vmatprep.subr.mxu0 0.0
            %1651 = vmatpush1.msra.mxu0 0.0
            %1652 = vmatprep.subr.mxu0 0.0
            %1653 = vmatpush1.msra.mxu0 0.0
            %1654 = vmatprep.subr.mxu0 0.0
            %1655 = vmatpush1.msra.mxu0 0.0
            %1656 = vmatprep.subr.mxu0 0.0
            %1657 = vmatpush1.msra.mxu0 0.0
            %1658 = vmatprep.subr.mxu0 0.0
            %1659 = vmatpush1.msra.mxu0 0.0
            %1660 = vmatprep.subr.mxu0 0.0
            %1661 = vmatpush1.msra.mxu0 0.0
            %1662 = vmatprep.subr.mxu0 0.0
            %1663 = vmatpush1.msra.mxu0 0.0
            %1664 = vmatprep.subr.mxu0 0.0
            %1665 = vmatpush1.msra.mxu0 0.0
            %1666 = vmatprep.subr.mxu0 0.0
            %1667 = vmatpush1.msra.mxu0 0.0
            %1668 = vmatprep.subr.mxu0 0.0
            %1669 = vmatpush1.msra.mxu0 0.0
            %1670 = vmatprep.subr.mxu0 0.0
            %1671 = vmatpush1.msra.mxu0 0.0
            %1672 = vmatprep.mubr.f32.mxu0 0.0
            %1673 = vmatmul.mubr.f32.gmra.mrb[0].mxu0 %v1580
            %v1674 = vpop.f32.mrb[0].mxu0
            %v1675 = vadd.f32 %v1606, %v1674
            %v1676 = vpop.f32.mrb[0].mxu0
            %1677 = vdwg.mxu0
            %v1678 = vsub.f32 0.0, %v1675
            %v1679 = vmul.f32 %v1678, 1.442695
            %v1680 = vpow.pop %v1679
            %v1681 = vadd.f32 %v1680, 1.0
            %v1682 = vrcp.pop %v1681
            %v1683 = vmul.f32 1.0, %v1682
            %v1684 = vmax.f32 %v1683, 0.0
            %v1685 = vmin.f32 %v1684, 20.0
            %vm1686 = vcmask 1024
            %1687 = vst.msk [vmem:[%s15] sm:$0x3] %vm1686, %v1685
        $region96: #{tpu_custom_call.1} parent=75 // pred_fallthru
          _
        // Predicated region
        $region128: #{tpu_custom_call.1} parent=75 // pred_check
          %p1688 = pneg %p371
        $region129: #{tpu_custom_call.1} parent=75 // pred_check_branch
          %1690 = sbr.rel (%p1688) target = $region131
        $region130: #{tpu_custom_call.1} parent=75 // pred_region
          _
        $region131: #{tpu_custom_call.1} parent=75 // pred_fallthru
          _
        // Predicated region
        $region132: #{tpu_custom_call.1} parent=75 // pred_check
          %p1691 = pneg %p371
        $region133: #{tpu_custom_call.1} parent=75 // pred_check_branch
          %1693 = sbr.rel (%p1691) target = $region135
        $region134: #{tpu_custom_call.1} parent=75 // pred_region
          _
        $region135: #{tpu_custom_call.1} parent=75 // pred_fallthru
          _
      $region76: #{tpu_custom_call.1} parent=5 // pred_fallthru
        _
      %p1694 = scmp.le.s32.totalorder 2, %s29
      // Predicated region
      $region136: #{tpu_custom_call.1} parent=5 // pred_check
        %p1695 = pneg %p1694
      $region137: #{tpu_custom_call.1} parent=5 // pred_check_branch
        %1697 = sbr.rel (%p1695) target = $region139
      $region138: #{tpu_custom_call.1} parent=5 // pred_region
        %s1698 = ssub.s32 %s29, 2
      $region139: #{tpu_custom_call.1} parent=5 // pred_fallthru
        _
    $region6: #{tpu_custom_call.1} parent=1 // loop_footer
      %s33 = sadd.s32 1, %s29
    $region7: #{tpu_custom_call.1} parent=1 // loop_footer_branch
      %28 = sbr.rel target = $region3
    $region8: #{tpu_custom_call.1} parent=1 // loop_exit
      _
    %1699 = vsyncpa [#allocation5], 1
    %s1700 = scalar_lea.sflag [#allocation5], 1
    %1701 = vsyncpa %s1700, 1
    %1702 = vsyncpa [#allocation7], 1
    %s1703 = scalar_lea.sflag [#allocation7], 1
    %1704 = vsyncpa %s1703, 1

</llo_original>
